<compile_context>
chip_gen: v7x
topology: tpu7x:2x2x1
jax: 0.10.0
libtpu: 0.0.40
codegen_flags: <defaults>
</compile_context>

<pallas_src>
import functools

import jax
import jax.numpy as jnp
from jax import lax
from jax.experimental import pallas as pl
from jax.experimental.pallas import tpu as pltpu


def _conv3x3_acc(buf_ref, w_ref, mask_l, mask_r, H, W):
    """3x3 conv (padding=1 baked into `buf_ref`) as 9 accumulated MXU matmuls.

    buf_ref: (C_in, (H+2)*W + 2) bf16 VMEM ref. Row-major flattened image laid out
             as [1 zero, W zeros (top pad row), H*W data, W zeros (bottom pad row),
             1 zero].  For tap k = 3*kh + kw the window is buf[:, s : s+H*W] with
             s = kh*W + kw (center tap == the data itself).
    w_ref:   (9, C_out, C_in) bf16 ref, tap k = 3*kh + kw.
    mask_l/mask_r: (1, H*W) f32 column masks; zero the output column whose
             kw=0 / kw=2 tap wrapped across a row edge.  Because the matmul is
             linear in its RHS columns, masking the summed group output is
             identical to masking each input window.
    Returns: (C_out, H*W) float32 accumulator.
    """
    HW = H * W
    cout = w_ref.shape[1]

    def tap_group(kw):
        acc = jnp.zeros((cout, HW), jnp.float32)
        for kh in range(3):
            s = kh * W + kw                     # flat offset of this tap's window
            acc = acc + jnp.dot(w_ref[3 * kh + kw], buf_ref[:, s:s + HW],
                                preferred_element_type=jnp.float32)
        return acc

    # Center column taps are exact; left/right tap groups get one output-side
    # row-edge mask multiply each.
    return tap_group(1) + mask_l * tap_group(0) + mask_r * tap_group(2)


def _double_conv_kernel(x_ref, w1_ref, s1_ref, b1_ref, w2_ref, s2_ref, b2_ref,
                        mask_ref, o_ref, xpad_ref, ypad_ref, *, H, W):
    # x_ref:   (1, Cin, H*W)   one image, row-major flattened spatial (lane axis)
    # w*_ref:  (9, Cout, Cin*) bf16 conv taps
    # s*/b*:   (Cout, 1)       folded BatchNorm scale / bias (eval mode)
    # mask_ref:(2, H*W) f32    [left-edge, right-edge] output column masks
    # o_ref:   (1, Cout, H*W)
    # xpad_ref/ypad_ref: VMEM scratch, zero-padded flattened buffers
    HW = H * W
    off = W + 1                       # interior start inside the padded flat buffer
    mask_l = mask_ref[0:1, :]
    mask_r = mask_ref[1:2, :]

    # --- stage 1: conv3x3(pad=1) -> BN (folded scale/bias) -> ReLU ---------------
    # Only the halo regions need zeroing; the interior is fully overwritten.
    xpad_ref[:, :off] = jnp.zeros((xpad_ref.shape[0], off), jnp.bfloat16)
    xpad_ref[:, off + HW:] = jnp.zeros((xpad_ref.shape[0], W + 1), jnp.bfloat16)
    xpad_ref[:, off:off + HW] = x_ref[0].astype(jnp.bfloat16)
    acc1 = _conv3x3_acc(xpad_ref, w1_ref, mask_l, mask_r, H, W)
    y1 = jnp.maximum(acc1 * s1_ref[...] + b1_ref[...], 0.0)

    # --- stage 2: conv3x3(pad=1) -> BN -> ReLU (intermediate stays in VMEM) ------
    ypad_ref[:, :off] = jnp.zeros((ypad_ref.shape[0], off), jnp.bfloat16)
    ypad_ref[:, off + HW:] = jnp.zeros((ypad_ref.shape[0], W + 1), jnp.bfloat16)
    ypad_ref[:, off:off + HW] = y1.astype(jnp.bfloat16)
    acc2 = _conv3x3_acc(ypad_ref, w2_ref, mask_l, mask_r, H, W)
    y2 = jnp.maximum(acc2 * s2_ref[...] + b2_ref[...], 0.0)

    o_ref[0] = y2.astype(o_ref.dtype)


def double_conv_forward(x, w1, bn1, w2, bn2, *, eps=1e-5):
    """Forward of double_conv(in_ch, out_ch) with default flags:
    Conv2d(3x3, pad=1) -> BatchNorm2d (eval: running stats) -> ReLU, twice.

    x: (N, in_ch, H, W) f32; w1: (out_ch, in_ch, 3, 3); w2: (out_ch, out_ch, 3, 3)
    bn1/bn2: (gamma, beta, running_mean, running_var), each (out_ch,)
    Returns (N, out_ch, H, W).
    """
    N, Cin, H, W = x.shape
    Cout = w1.shape[0]
    HW = H * W
    Lp = (H + 2) * W + 2                         # padded flattened buffer length

    def fold_bn(gamma, beta, mean, var):
        scale = gamma / jnp.sqrt(var + eps)
        bias = beta - mean * scale
        return (scale.reshape(-1, 1).astype(jnp.float32),
                bias.reshape(-1, 1).astype(jnp.float32))

    s1, b1 = fold_bn(*bn1)
    s2, b2 = fold_bn(*bn2)

    def to_taps(w):     # (Cout, Cin, 3, 3) -> (9, Cout, Cin) bf16, tap k = 3*kh + kw
        return (jnp.transpose(w, (2, 3, 0, 1))
                .reshape(9, w.shape[0], w.shape[1]).astype(jnp.bfloat16))

    w1t, w2t = to_taps(w1), to_taps(w2)

    # Output-column masks for the horizontally shifted tap groups (kw = 0 / kw = 2).
    col = jnp.arange(HW, dtype=jnp.int32) % W
    mask = jnp.stack([(col != 0), (col != W - 1)]).astype(jnp.float32)   # (2, HW)

    x_flat = x.reshape(N, Cin, HW)               # free reshape (same HBM layout)

    kernel = functools.partial(_double_conv_kernel, H=H, W=W)

    out_flat = pl.pallas_call(
        kernel,
        out_shape=jax.ShapeDtypeStruct((N, Cout, HW), x.dtype),
        grid=(N,),
        in_specs=[
            pl.BlockSpec((1, Cin, HW), lambda n: (n, 0, 0)),     # image
            pl.BlockSpec((9, Cout, Cin), lambda n: (0, 0, 0)),   # conv1 taps
            pl.BlockSpec((Cout, 1), lambda n: (0, 0)),           # bn1 scale
            pl.BlockSpec((Cout, 1), lambda n: (0, 0)),           # bn1 bias
            pl.BlockSpec((9, Cout, Cout), lambda n: (0, 0, 0)),  # conv2 taps
            pl.BlockSpec((Cout, 1), lambda n: (0, 0)),           # bn2 scale
            pl.BlockSpec((Cout, 1), lambda n: (0, 0)),           # bn2 bias
            pl.BlockSpec((2, HW), lambda n: (0, 0)),             # edge masks
        ],
        out_specs=pl.BlockSpec((1, Cout, HW), lambda n: (n, 0, 0)),
        scratch_shapes=[pltpu.VMEM((Cin, Lp), jnp.bfloat16),
                        pltpu.VMEM((Cout, Lp), jnp.bfloat16)],
        compiler_params=pltpu.CompilerParams(
            dimension_semantics=("parallel",),
            vmem_limit_bytes=32 * 1024 * 1024),
    )(x_flat, w1t, s1, b1, w2t, s2, b2, mask)

    return out_flat.reshape(N, Cout, H, W)       # free reshape back to NCHW


def _reference(x, w1, bn1, w2, bn2, eps=1e-5):
    """Pure-JAX f32 reference (PyTorch eval-mode semantics)."""
    def stage(z, w, bn):
        dn = lax.conv_dimension_numbers(z.shape, w.shape, ("NCHW", "OIHW", "NCHW"))
        z = lax.conv_general_dilated(z, w, window_strides=(1, 1),
                                     padding=((1, 1), (1, 1)),
                                     dimension_numbers=dn)
        gamma, beta, mean, var = bn
        scale = (gamma / jnp.sqrt(var + eps)).reshape(1, -1, 1, 1)
        bias = beta.reshape(1, -1, 1, 1) - mean.reshape(1, -1, 1, 1) * scale
        return jnp.maximum(z * scale + bias, 0.0)
    return stage(stage(x, w1, bn1), w2, bn2)


if __name__ == "__main__":
    in_ch, out_ch = 4, 8
    N, H, W = 2, 16, 16

    ks = jax.random.split(jax.random.PRNGKey(0), 11)
    x = jax.random.normal(ks[0], (N, in_ch, H, W), dtype=jnp.float32)
    # nn.Conv2d weight shapes: (out_ch, in_ch, 3, 3) and (out_ch, out_ch, 3, 3).
    w1 = jax.random.normal(ks[1], (out_ch, in_ch, 3, 3), dtype=jnp.float32) * 0.1
    w2 = jax.random.normal(ks[2], (out_ch, out_ch, 3, 3), dtype=jnp.float32) * 0.1
    # BatchNorm2d params (eval mode): gamma, beta, running_mean, running_var.
    bn1 = (1.0 + 0.1 * jax.random.normal(ks[3], (out_ch,), jnp.float32),
           0.1 * jax.random.normal(ks[4], (out_ch,), jnp.float32),
           0.1 * jax.random.normal(ks[5], (out_ch,), jnp.float32),
           0.5 + jax.random.uniform(ks[6], (out_ch,), jnp.float32))
    bn2 = (1.0 + 0.1 * jax.random.normal(ks[7], (out_ch,), jnp.float32),
           0.1 * jax.random.normal(ks[8], (out_ch,), jnp.float32),
           0.1 * jax.random.normal(ks[9], (out_ch,), jnp.float32),
           0.5 + jax.random.uniform(ks[10], (out_ch,), jnp.float32))

    out = double_conv_forward(x, w1, bn1, w2, bn2)
    jax.block_until_ready(out)

    ref = _reference(x, w1, bn1, w2, bn2)
    assert out.shape == (N, out_ch, H, W), out.shape
    # bf16 matmul operands (f32 accumulation) -> loose-ish tolerance vs f32 reference.
    assert jnp.allclose(out, ref, atol=5e-2, rtol=5e-2), \
        float(jnp.max(jnp.abs(out - ref)))

    print("KERNEL_OK")
</pallas_src>

<mosaic_0001>
module attributes {stable_mosaic.version = 11 : i64} {
  func.func @_double_conv_kernel(%arg0: i32, %arg1: memref<1x4x256xf32, #tpu.memory_space<vmem>>, %arg2: memref<9x8x4xbf16, #tpu.memory_space<vmem>>, %arg3: memref<8x1xf32, #tpu.memory_space<vmem>>, %arg4: memref<8x1xf32, #tpu.memory_space<vmem>>, %arg5: memref<9x8x8xbf16, #tpu.memory_space<vmem>>, %arg6: memref<8x1xf32, #tpu.memory_space<vmem>>, %arg7: memref<8x1xf32, #tpu.memory_space<vmem>>, %arg8: memref<2x256xf32, #tpu.memory_space<vmem>>, %arg9: memref<1x8x256xf32, #tpu.memory_space<vmem>>, %arg10: memref<4x290xbf16, #tpu.memory_space<vmem>>, %arg11: memref<8x290xbf16, #tpu.memory_space<vmem>>) attributes {dimension_semantics = [#tpu.dimension_semantics<parallel>], iteration_bounds = array<i64: 2>, scalar_prefetch = 0 : i64, scratch_operands = 2 : i64, tpu.core_type = #tpu.core_type<tc>, window_params = [{transform_indices = @transform_0, window_bounds = array<i64: 1, 4, 256>}, {pipeline_mode = #tpu.pipeline_mode<synchronous>, transform_indices = @transform_1, window_bounds = array<i64: 9, 8, 4>}, {pipeline_mode = #tpu.pipeline_mode<synchronous>, transform_indices = @transform_2, window_bounds = array<i64: 8, 1>}, {pipeline_mode = #tpu.pipeline_mode<synchronous>, transform_indices = @transform_3, window_bounds = array<i64: 8, 1>}, {pipeline_mode = #tpu.pipeline_mode<synchronous>, transform_indices = @transform_4, window_bounds = array<i64: 9, 8, 8>}, {pipeline_mode = #tpu.pipeline_mode<synchronous>, transform_indices = @transform_5, window_bounds = array<i64: 8, 1>}, {pipeline_mode = #tpu.pipeline_mode<synchronous>, transform_indices = @transform_6, window_bounds = array<i64: 8, 1>}, {pipeline_mode = #tpu.pipeline_mode<synchronous>, transform_indices = @transform_7, window_bounds = array<i64: 2, 256>}, {transform_indices = @transform_8, window_bounds = array<i64: 1, 8, 256>}]} {
    %c0 = arith.constant 0 : index
    %c0_0 = arith.constant 0 : index
    %0 = vector.load %arg8[%c0, %c0_0] : memref<2x256xf32, #tpu.memory_space<vmem>>, vector<1x256xf32>
    %c1 = arith.constant 1 : index
    %c0_1 = arith.constant 0 : index
    %1 = vector.load %arg8[%c1, %c0_1] : memref<2x256xf32, #tpu.memory_space<vmem>>, vector<1x256xf32>
    %cst = arith.constant 0.000000e+00 : bf16
    %2 = vector.broadcast %cst : bf16 to vector<4x17xbf16>
    %c0_2 = arith.constant 0 : index
    %c0_3 = arith.constant 0 : index
    %3 = vector.load %arg10[%c0_2, %c0_3] : memref<4x290xbf16, #tpu.memory_space<vmem>>, vector<4x17xbf16>
    tpu.vector_store %arg10[%c0_2, %c0_3], %2 {strides = array<i32>} : memref<4x290xbf16, #tpu.memory_space<vmem>>, vector<4x17xbf16>,
    %cst_4 = arith.constant 0.000000e+00 : bf16
    %4 = vector.broadcast %cst_4 : bf16 to vector<4x17xbf16>
    %c0_5 = arith.constant 0 : index
    %c273 = arith.constant 273 : index
    %5 = vector.load %arg10[%c0_5, %c273] : memref<4x290xbf16, #tpu.memory_space<vmem>>, vector<4x17xbf16>
    tpu.vector_store %arg10[%c0_5, %c273], %4 {strides = array<i32>} : memref<4x290xbf16, #tpu.memory_space<vmem>>, vector<4x17xbf16>,
    %c0_6 = arith.constant 0 : index
    %c0_7 = arith.constant 0 : index
    %c0_8 = arith.constant 0 : index
    %6 = vector.load %arg1[%c0_6, %c0_7, %c0_8] : memref<1x4x256xf32, #tpu.memory_space<vmem>>, vector<1x4x256xf32>
    %7 = vector.shape_cast %6 : vector<1x4x256xf32> to vector<4x256xf32>
    %8 = arith.truncf %7 : vector<4x256xf32> to vector<4x256xbf16>
    %c0_9 = arith.constant 0 : index
    %c17 = arith.constant 17 : index
    %9 = vector.load %arg10[%c0_9, %c17] : memref<4x290xbf16, #tpu.memory_space<vmem>>, vector<4x256xbf16>
    tpu.vector_store %arg10[%c0_9, %c17], %8 {strides = array<i32>} : memref<4x290xbf16, #tpu.memory_space<vmem>>, vector<4x256xbf16>,
    %cst_10 = arith.constant 0.000000e+00 : f32
    %10 = vector.broadcast %cst_10 : f32 to vector<8x256xf32>
    %c1_11 = arith.constant 1 : index
    %c0_12 = arith.constant 0 : index
    %c0_13 = arith.constant 0 : index
    %11 = vector.load %arg2[%c1_11, %c0_12, %c0_13] : memref<9x8x4xbf16, #tpu.memory_space<vmem>>, vector<1x8x4xbf16>
    %12 = vector.shape_cast %11 : vector<1x8x4xbf16> to vector<8x4xbf16>
    %c0_14 = arith.constant 0 : index
    %c1_15 = arith.constant 1 : index
    %13 = vector.load %arg10[%c0_14, %c1_15] : memref<4x290xbf16, #tpu.memory_space<vmem>>, vector<4x256xbf16>
    %cst_16 = arith.constant dense<0.000000e+00> : vector<8x256xf32>
    %14 = tpu.matmul %12, %13, %cst_16 {dimension_numbers = #tpu.dot_dimension_numbers<[1], [0], [0], [1], [0, 0, 1, 1], [], []>} : vector<8x4xbf16>, vector<4x256xbf16>, vector<8x256xf32> -> vector<8x256xf32>
    %15 = arith.addf %10, %14 : vector<8x256xf32>
    %c4 = arith.constant 4 : index
    %c0_17 = arith.constant 0 : index
    %c0_18 = arith.constant 0 : index
    %16 = vector.load %arg2[%c4, %c0_17, %c0_18] : memref<9x8x4xbf16, #tpu.memory_space<vmem>>, vector<1x8x4xbf16>
    %17 = vector.shape_cast %16 : vector<1x8x4xbf16> to vector<8x4xbf16>
    %c0_19 = arith.constant 0 : index
    %c17_20 = arith.constant 17 : index
    %18 = vector.load %arg10[%c0_19, %c17_20] : memref<4x290xbf16, #tpu.memory_space<vmem>>, vector<4x256xbf16>
    %cst_21 = arith.constant dense<0.000000e+00> : vector<8x256xf32>
    %19 = tpu.matmul %17, %18, %cst_21 {dimension_numbers = #tpu.dot_dimension_numbers<[1], [0], [0], [1], [0, 0, 1, 1], [], []>} : vector<8x4xbf16>, vector<4x256xbf16>, vector<8x256xf32> -> vector<8x256xf32>
    %20 = arith.addf %15, %19 : vector<8x256xf32>
    %c7 = arith.constant 7 : index
    %c0_22 = arith.constant 0 : index
    %c0_23 = arith.constant 0 : index
    %21 = vector.load %arg2[%c7, %c0_22, %c0_23] : memref<9x8x4xbf16, #tpu.memory_space<vmem>>, vector<1x8x4xbf16>
    %22 = vector.shape_cast %21 : vector<1x8x4xbf16> to vector<8x4xbf16>
    %c0_24 = arith.constant 0 : index
    %c33 = arith.constant 33 : index
    %23 = vector.load %arg10[%c0_24, %c33] : memref<4x290xbf16, #tpu.memory_space<vmem>>, vector<4x256xbf16>
    %cst_25 = arith.constant dense<0.000000e+00> : vector<8x256xf32>
    %24 = tpu.matmul %22, %23, %cst_25 {dimension_numbers = #tpu.dot_dimension_numbers<[1], [0], [0], [1], [0, 0, 1, 1], [], []>} : vector<8x4xbf16>, vector<4x256xbf16>, vector<8x256xf32> -> vector<8x256xf32>
    %25 = arith.addf %20, %24 : vector<8x256xf32>
    %cst_26 = arith.constant 0.000000e+00 : f32
    %26 = vector.broadcast %cst_26 : f32 to vector<8x256xf32>
    %c0_27 = arith.constant 0 : index
    %c0_28 = arith.constant 0 : index
    %c0_29 = arith.constant 0 : index
    %27 = vector.load %arg2[%c0_27, %c0_28, %c0_29] : memref<9x8x4xbf16, #tpu.memory_space<vmem>>, vector<1x8x4xbf16>
    %28 = vector.shape_cast %27 : vector<1x8x4xbf16> to vector<8x4xbf16>
    %c0_30 = arith.constant 0 : index
    %c0_31 = arith.constant 0 : index
    %29 = vector.load %arg10[%c0_30, %c0_31] : memref<4x290xbf16, #tpu.memory_space<vmem>>, vector<4x256xbf16>
    %cst_32 = arith.constant dense<0.000000e+00> : vector<8x256xf32>
    %30 = tpu.matmul %28, %29, %cst_32 {dimension_numbers = #tpu.dot_dimension_numbers<[1], [0], [0], [1], [0, 0, 1, 1], [], []>} : vector<8x4xbf16>, vector<4x256xbf16>, vector<8x256xf32> -> vector<8x256xf32>
    %31 = arith.addf %26, %30 : vector<8x256xf32>
    %c3 = arith.constant 3 : index
    %c0_33 = arith.constant 0 : index
    %c0_34 = arith.constant 0 : index
    %32 = vector.load %arg2[%c3, %c0_33, %c0_34] : memref<9x8x4xbf16, #tpu.memory_space<vmem>>, vector<1x8x4xbf16>
    %33 = vector.shape_cast %32 : vector<1x8x4xbf16> to vector<8x4xbf16>
    %c0_35 = arith.constant 0 : index
    %c16 = arith.constant 16 : index
    %34 = vector.load %arg10[%c0_35, %c16] : memref<4x290xbf16, #tpu.memory_space<vmem>>, vector<4x256xbf16>
    %cst_36 = arith.constant dense<0.000000e+00> : vector<8x256xf32>
    %35 = tpu.matmul %33, %34, %cst_36 {dimension_numbers = #tpu.dot_dimension_numbers<[1], [0], [0], [1], [0, 0, 1, 1], [], []>} : vector<8x4xbf16>, vector<4x256xbf16>, vector<8x256xf32> -> vector<8x256xf32>
    %36 = arith.addf %31, %35 : vector<8x256xf32>
    %c6 = arith.constant 6 : index
    %c0_37 = arith.constant 0 : index
    %c0_38 = arith.constant 0 : index
    %37 = vector.load %arg2[%c6, %c0_37, %c0_38] : memref<9x8x4xbf16, #tpu.memory_space<vmem>>, vector<1x8x4xbf16>
    %38 = vector.shape_cast %37 : vector<1x8x4xbf16> to vector<8x4xbf16>
    %c0_39 = arith.constant 0 : index
    %c32 = arith.constant 32 : index
    %39 = vector.load %arg10[%c0_39, %c32] : memref<4x290xbf16, #tpu.memory_space<vmem>>, vector<4x256xbf16>
    %cst_40 = arith.constant dense<0.000000e+00> : vector<8x256xf32>
    %40 = tpu.matmul %38, %39, %cst_40 {dimension_numbers = #tpu.dot_dimension_numbers<[1], [0], [0], [1], [0, 0, 1, 1], [], []>} : vector<8x4xbf16>, vector<4x256xbf16>, vector<8x256xf32> -> vector<8x256xf32>
    %41 = arith.addf %36, %40 : vector<8x256xf32>
    %42 = vector.broadcast %0 : vector<1x256xf32> to vector<8x256xf32>
    %43 = arith.mulf %42, %41 : vector<8x256xf32>
    %44 = arith.addf %25, %43 : vector<8x256xf32>
    %cst_41 = arith.constant 0.000000e+00 : f32
    %45 = vector.broadcast %cst_41 : f32 to vector<8x256xf32>
    %c2 = arith.constant 2 : index
    %c0_42 = arith.constant 0 : index
    %c0_43 = arith.constant 0 : index
    %46 = vector.load %arg2[%c2, %c0_42, %c0_43] : memref<9x8x4xbf16, #tpu.memory_space<vmem>>, vector<1x8x4xbf16>
    %47 = vector.shape_cast %46 : vector<1x8x4xbf16> to vector<8x4xbf16>
    %c0_44 = arith.constant 0 : index
    %c2_45 = arith.constant 2 : index
    %48 = vector.load %arg10[%c0_44, %c2_45] : memref<4x290xbf16, #tpu.memory_space<vmem>>, vector<4x256xbf16>
    %cst_46 = arith.constant dense<0.000000e+00> : vector<8x256xf32>
    %49 = tpu.matmul %47, %48, %cst_46 {dimension_numbers = #tpu.dot_dimension_numbers<[1], [0], [0], [1], [0, 0, 1, 1], [], []>} : vector<8x4xbf16>, vector<4x256xbf16>, vector<8x256xf32> -> vector<8x256xf32>
    %50 = arith.addf %45, %49 : vector<8x256xf32>
    %c5 = arith.constant 5 : index
    %c0_47 = arith.constant 0 : index
    %c0_48 = arith.constant 0 : index
    %51 = vector.load %arg2[%c5, %c0_47, %c0_48] : memref<9x8x4xbf16, #tpu.memory_space<vmem>>, vector<1x8x4xbf16>
    %52 = vector.shape_cast %51 : vector<1x8x4xbf16> to vector<8x4xbf16>
    %c0_49 = arith.constant 0 : index
    %c18 = arith.constant 18 : index
    %53 = vector.load %arg10[%c0_49, %c18] : memref<4x290xbf16, #tpu.memory_space<vmem>>, vector<4x256xbf16>
    %cst_50 = arith.constant dense<0.000000e+00> : vector<8x256xf32>
    %54 = tpu.matmul %52, %53, %cst_50 {dimension_numbers = #tpu.dot_dimension_numbers<[1], [0], [0], [1], [0, 0, 1, 1], [], []>} : vector<8x4xbf16>, vector<4x256xbf16>, vector<8x256xf32> -> vector<8x256xf32>
    %55 = arith.addf %50, %54 : vector<8x256xf32>
    %c8 = arith.constant 8 : index
    %c0_51 = arith.constant 0 : index
    %c0_52 = arith.constant 0 : index
    %56 = vector.load %arg2[%c8, %c0_51, %c0_52] : memref<9x8x4xbf16, #tpu.memory_space<vmem>>, vector<1x8x4xbf16>
    %57 = vector.shape_cast %56 : vector<1x8x4xbf16> to vector<8x4xbf16>
    %c0_53 = arith.constant 0 : index
    %c34 = arith.constant 34 : index
    %58 = vector.load %arg10[%c0_53, %c34] : memref<4x290xbf16, #tpu.memory_space<vmem>>, vector<4x256xbf16>
    %cst_54 = arith.constant dense<0.000000e+00> : vector<8x256xf32>
    %59 = tpu.matmul %57, %58, %cst_54 {dimension_numbers = #tpu.dot_dimension_numbers<[1], [0], [0], [1], [0, 0, 1, 1], [], []>} : vector<8x4xbf16>, vector<4x256xbf16>, vector<8x256xf32> -> vector<8x256xf32>
    %60 = arith.addf %55, %59 : vector<8x256xf32>
    %61 = vector.broadcast %1 : vector<1x256xf32> to vector<8x256xf32>
    %62 = arith.mulf %61, %60 : vector<8x256xf32>
    %63 = arith.addf %44, %62 : vector<8x256xf32>
    %c0_55 = arith.constant 0 : index
    %c0_56 = arith.constant 0 : index
    %64 = vector.load %arg3[%c0_55, %c0_56] : memref<8x1xf32, #tpu.memory_space<vmem>>, vector<8x1xf32>
    %65 = vector.broadcast %64 : vector<8x1xf32> to vector<8x256xf32>
    %66 = arith.mulf %63, %65 : vector<8x256xf32>
    %c0_57 = arith.constant 0 : index
    %c0_58 = arith.constant 0 : index
    %67 = vector.load %arg4[%c0_57, %c0_58] : memref<8x1xf32, #tpu.memory_space<vmem>>, vector<8x1xf32>
    %68 = vector.broadcast %67 : vector<8x1xf32> to vector<8x256xf32>
    %69 = arith.addf %66, %68 : vector<8x256xf32>
    %cst_59 = arith.constant 0.000000e+00 : f32
    %70 = vector.broadcast %cst_59 : f32 to vector<8x256xf32>
    %71 = arith.maximumf %69, %70 : vector<8x256xf32>
    %cst_60 = arith.constant 0.000000e+00 : bf16
    %72 = vector.broadcast %cst_60 : bf16 to vector<8x17xbf16>
    %c0_61 = arith.constant 0 : index
    %c0_62 = arith.constant 0 : index
    %73 = vector.load %arg11[%c0_61, %c0_62] : memref<8x290xbf16, #tpu.memory_space<vmem>>, vector<8x17xbf16>
    tpu.vector_store %arg11[%c0_61, %c0_62], %72 {strides = array<i32>} : memref<8x290xbf16, #tpu.memory_space<vmem>>, vector<8x17xbf16>,
    %cst_63 = arith.constant 0.000000e+00 : bf16
    %74 = vector.broadcast %cst_63 : bf16 to vector<8x17xbf16>
    %c0_64 = arith.constant 0 : index
    %c273_65 = arith.constant 273 : index
    %75 = vector.load %arg11[%c0_64, %c273_65] : memref<8x290xbf16, #tpu.memory_space<vmem>>, vector<8x17xbf16>
    tpu.vector_store %arg11[%c0_64, %c273_65], %74 {strides = array<i32>} : memref<8x290xbf16, #tpu.memory_space<vmem>>, vector<8x17xbf16>,
    %76 = arith.truncf %71 : vector<8x256xf32> to vector<8x256xbf16>
    %c0_66 = arith.constant 0 : index
    %c17_67 = arith.constant 17 : index
    %77 = vector.load %arg11[%c0_66, %c17_67] : memref<8x290xbf16, #tpu.memory_space<vmem>>, vector<8x256xbf16>
    tpu.vector_store %arg11[%c0_66, %c17_67], %76 {strides = array<i32>} : memref<8x290xbf16, #tpu.memory_space<vmem>>, vector<8x256xbf16>,
    %cst_68 = arith.constant 0.000000e+00 : f32
    %78 = vector.broadcast %cst_68 : f32 to vector<8x256xf32>
    %c1_69 = arith.constant 1 : index
    %c0_70 = arith.constant 0 : index
    %c0_71 = arith.constant 0 : index
    %79 = vector.load %arg5[%c1_69, %c0_70, %c0_71] : memref<9x8x8xbf16, #tpu.memory_space<vmem>>, vector<1x8x8xbf16>
    %80 = vector.shape_cast %79 : vector<1x8x8xbf16> to vector<8x8xbf16>
    %c0_72 = arith.constant 0 : index
    %c1_73 = arith.constant 1 : index
    %81 = vector.load %arg11[%c0_72, %c1_73] : memref<8x290xbf16, #tpu.memory_space<vmem>>, vector<8x256xbf16>
    %cst_74 = arith.constant dense<0.000000e+00> : vector<8x256xf32>
    %82 = tpu.matmul %80, %81, %cst_74 {dimension_numbers = #tpu.dot_dimension_numbers<[1], [0], [0], [1], [0, 0, 1, 1], [], []>} : vector<8x8xbf16>, vector<8x256xbf16>, vector<8x256xf32> -> vector<8x256xf32>
    %83 = arith.addf %78, %82 : vector<8x256xf32>
    %c4_75 = arith.constant 4 : index
    %c0_76 = arith.constant 0 : index
    %c0_77 = arith.constant 0 : index
    %84 = vector.load %arg5[%c4_75, %c0_76, %c0_77] : memref<9x8x8xbf16, #tpu.memory_space<vmem>>, vector<1x8x8xbf16>
    %85 = vector.shape_cast %84 : vector<1x8x8xbf16> to vector<8x8xbf16>
    %c0_78 = arith.constant 0 : index
    %c17_79 = arith.constant 17 : index
    %86 = vector.load %arg11[%c0_78, %c17_79] : memref<8x290xbf16, #tpu.memory_space<vmem>>, vector<8x256xbf16>
    %cst_80 = arith.constant dense<0.000000e+00> : vector<8x256xf32>
    %87 = tpu.matmul %85, %86, %cst_80 {dimension_numbers = #tpu.dot_dimension_numbers<[1], [0], [0], [1], [0, 0, 1, 1], [], []>} : vector<8x8xbf16>, vector<8x256xbf16>, vector<8x256xf32> -> vector<8x256xf32>
    %88 = arith.addf %83, %87 : vector<8x256xf32>
    %c7_81 = arith.constant 7 : index
    %c0_82 = arith.constant 0 : index
    %c0_83 = arith.constant 0 : index
    %89 = vector.load %arg5[%c7_81, %c0_82, %c0_83] : memref<9x8x8xbf16, #tpu.memory_space<vmem>>, vector<1x8x8xbf16>
    %90 = vector.shape_cast %89 : vector<1x8x8xbf16> to vector<8x8xbf16>
    %c0_84 = arith.constant 0 : index
    %c33_85 = arith.constant 33 : index
    %91 = vector.load %arg11[%c0_84, %c33_85] : memref<8x290xbf16, #tpu.memory_space<vmem>>, vector<8x256xbf16>
    %cst_86 = arith.constant dense<0.000000e+00> : vector<8x256xf32>
    %92 = tpu.matmul %90, %91, %cst_86 {dimension_numbers = #tpu.dot_dimension_numbers<[1], [0], [0], [1], [0, 0, 1, 1], [], []>} : vector<8x8xbf16>, vector<8x256xbf16>, vector<8x256xf32> -> vector<8x256xf32>
    %93 = arith.addf %88, %92 : vector<8x256xf32>
    %cst_87 = arith.constant 0.000000e+00 : f32
    %94 = vector.broadcast %cst_87 : f32 to vector<8x256xf32>
    %c0_88 = arith.constant 0 : index
    %c0_89 = arith.constant 0 : index
    %c0_90 = arith.constant 0 : index
    %95 = vector.load %arg5[%c0_88, %c0_89, %c0_90] : memref<9x8x8xbf16, #tpu.memory_space<vmem>>, vector<1x8x8xbf16>
    %96 = vector.shape_cast %95 : vector<1x8x8xbf16> to vector<8x8xbf16>
    %c0_91 = arith.constant 0 : index
    %c0_92 = arith.constant 0 : index
    %97 = vector.load %arg11[%c0_91, %c0_92] : memref<8x290xbf16, #tpu.memory_space<vmem>>, vector<8x256xbf16>
    %cst_93 = arith.constant dense<0.000000e+00> : vector<8x256xf32>
    %98 = tpu.matmul %96, %97, %cst_93 {dimension_numbers = #tpu.dot_dimension_numbers<[1], [0], [0], [1], [0, 0, 1, 1], [], []>} : vector<8x8xbf16>, vector<8x256xbf16>, vector<8x256xf32> -> vector<8x256xf32>
    %99 = arith.addf %94, %98 : vector<8x256xf32>
    %c3_94 = arith.constant 3 : index
    %c0_95 = arith.constant 0 : index
    %c0_96 = arith.constant 0 : index
    %100 = vector.load %arg5[%c3_94, %c0_95, %c0_96] : memref<9x8x8xbf16, #tpu.memory_space<vmem>>, vector<1x8x8xbf16>
    %101 = vector.shape_cast %100 : vector<1x8x8xbf16> to vector<8x8xbf16>
    %c0_97 = arith.constant 0 : index
    %c16_98 = arith.constant 16 : index
    %102 = vector.load %arg11[%c0_97, %c16_98] : memref<8x290xbf16, #tpu.memory_space<vmem>>, vector<8x256xbf16>
    %cst_99 = arith.constant dense<0.000000e+00> : vector<8x256xf32>
    %103 = tpu.matmul %101, %102, %cst_99 {dimension_numbers = #tpu.dot_dimension_numbers<[1], [0], [0], [1], [0, 0, 1, 1], [], []>} : vector<8x8xbf16>, vector<8x256xbf16>, vector<8x256xf32> -> vector<8x256xf32>
    %104 = arith.addf %99, %103 : vector<8x256xf32>
    %c6_100 = arith.constant 6 : index
    %c0_101 = arith.constant 0 : index
    %c0_102 = arith.constant 0 : index
    %105 = vector.load %arg5[%c6_100, %c0_101, %c0_102] : memref<9x8x8xbf16, #tpu.memory_space<vmem>>, vector<1x8x8xbf16>
    %106 = vector.shape_cast %105 : vector<1x8x8xbf16> to vector<8x8xbf16>
    %c0_103 = arith.constant 0 : index
    %c32_104 = arith.constant 32 : index
    %107 = vector.load %arg11[%c0_103, %c32_104] : memref<8x290xbf16, #tpu.memory_space<vmem>>, vector<8x256xbf16>
    %cst_105 = arith.constant dense<0.000000e+00> : vector<8x256xf32>
    %108 = tpu.matmul %106, %107, %cst_105 {dimension_numbers = #tpu.dot_dimension_numbers<[1], [0], [0], [1], [0, 0, 1, 1], [], []>} : vector<8x8xbf16>, vector<8x256xbf16>, vector<8x256xf32> -> vector<8x256xf32>
    %109 = arith.addf %104, %108 : vector<8x256xf32>
    %110 = vector.broadcast %0 : vector<1x256xf32> to vector<8x256xf32>
    %111 = arith.mulf %110, %109 : vector<8x256xf32>
    %112 = arith.addf %93, %111 : vector<8x256xf32>
    %cst_106 = arith.constant 0.000000e+00 : f32
    %113 = vector.broadcast %cst_106 : f32 to vector<8x256xf32>
    %c2_107 = arith.constant 2 : index
    %c0_108 = arith.constant 0 : index
    %c0_109 = arith.constant 0 : index
    %114 = vector.load %arg5[%c2_107, %c0_108, %c0_109] : memref<9x8x8xbf16, #tpu.memory_space<vmem>>, vector<1x8x8xbf16>
    %115 = vector.shape_cast %114 : vector<1x8x8xbf16> to vector<8x8xbf16>
    %c0_110 = arith.constant 0 : index
    %c2_111 = arith.constant 2 : index
    %116 = vector.load %arg11[%c0_110, %c2_111] : memref<8x290xbf16, #tpu.memory_space<vmem>>, vector<8x256xbf16>
    %cst_112 = arith.constant dense<0.000000e+00> : vector<8x256xf32>
    %117 = tpu.matmul %115, %116, %cst_112 {dimension_numbers = #tpu.dot_dimension_numbers<[1], [0], [0], [1], [0, 0, 1, 1], [], []>} : vector<8x8xbf16>, vector<8x256xbf16>, vector<8x256xf32> -> vector<8x256xf32>
    %118 = arith.addf %113, %117 : vector<8x256xf32>
    %c5_113 = arith.constant 5 : index
    %c0_114 = arith.constant 0 : index
    %c0_115 = arith.constant 0 : index
    %119 = vector.load %arg5[%c5_113, %c0_114, %c0_115] : memref<9x8x8xbf16, #tpu.memory_space<vmem>>, vector<1x8x8xbf16>
    %120 = vector.shape_cast %119 : vector<1x8x8xbf16> to vector<8x8xbf16>
    %c0_116 = arith.constant 0 : index
    %c18_117 = arith.constant 18 : index
    %121 = vector.load %arg11[%c0_116, %c18_117] : memref<8x290xbf16, #tpu.memory_space<vmem>>, vector<8x256xbf16>
    %cst_118 = arith.constant dense<0.000000e+00> : vector<8x256xf32>
    %122 = tpu.matmul %120, %121, %cst_118 {dimension_numbers = #tpu.dot_dimension_numbers<[1], [0], [0], [1], [0, 0, 1, 1], [], []>} : vector<8x8xbf16>, vector<8x256xbf16>, vector<8x256xf32> -> vector<8x256xf32>
    %123 = arith.addf %118, %122 : vector<8x256xf32>
    %c8_119 = arith.constant 8 : index
    %c0_120 = arith.constant 0 : index
    %c0_121 = arith.constant 0 : index
    %124 = vector.load %arg5[%c8_119, %c0_120, %c0_121] : memref<9x8x8xbf16, #tpu.memory_space<vmem>>, vector<1x8x8xbf16>
    %125 = vector.shape_cast %124 : vector<1x8x8xbf16> to vector<8x8xbf16>
    %c0_122 = arith.constant 0 : index
    %c34_123 = arith.constant 34 : index
    %126 = vector.load %arg11[%c0_122, %c34_123] : memref<8x290xbf16, #tpu.memory_space<vmem>>, vector<8x256xbf16>
    %cst_124 = arith.constant dense<0.000000e+00> : vector<8x256xf32>
    %127 = tpu.matmul %125, %126, %cst_124 {dimension_numbers = #tpu.dot_dimension_numbers<[1], [0], [0], [1], [0, 0, 1, 1], [], []>} : vector<8x8xbf16>, vector<8x256xbf16>, vector<8x256xf32> -> vector<8x256xf32>
    %128 = arith.addf %123, %127 : vector<8x256xf32>
    %129 = vector.broadcast %1 : vector<1x256xf32> to vector<8x256xf32>
    %130 = arith.mulf %129, %128 : vector<8x256xf32>
    %131 = arith.addf %112, %130 : vector<8x256xf32>
    %c0_125 = arith.constant 0 : index
    %c0_126 = arith.constant 0 : index
    %132 = vector.load %arg6[%c0_125, %c0_126] : memref<8x1xf32, #tpu.memory_space<vmem>>, vector<8x1xf32>
    %133 = vector.broadcast %132 : vector<8x1xf32> to vector<8x256xf32>
    %134 = arith.mulf %131, %133 : vector<8x256xf32>
    %c0_127 = arith.constant 0 : index
    %c0_128 = arith.constant 0 : index
    %135 = vector.load %arg7[%c0_127, %c0_128] : memref<8x1xf32, #tpu.memory_space<vmem>>, vector<8x1xf32>
    %136 = vector.broadcast %135 : vector<8x1xf32> to vector<8x256xf32>
    %137 = arith.addf %134, %136 : vector<8x256xf32>
    %cst_129 = arith.constant 0.000000e+00 : f32
    %138 = vector.broadcast %cst_129 : f32 to vector<8x256xf32>
    %139 = arith.maximumf %137, %138 : vector<8x256xf32>
    %c0_130 = arith.constant 0 : index
    %c0_131 = arith.constant 0 : index
    %c0_132 = arith.constant 0 : index
    %140 = vector.load %arg9[%c0_130, %c0_131, %c0_132] : memref<1x8x256xf32, #tpu.memory_space<vmem>>, vector<1x8x256xf32>
    %141 = vector.shape_cast %140 : vector<1x8x256xf32> to vector<8x256xf32>
    %142 = vector.shape_cast %139 : vector<8x256xf32> to vector<1x8x256xf32>
    tpu.vector_store %arg9[%c0_130, %c0_131, %c0_132], %142 {strides = array<i32>} : memref<1x8x256xf32, #tpu.memory_space<vmem>>, vector<1x8x256xf32>,
    return
  }
  func.func @transform_0(%arg0: i32) -> (i32, i32, i32) {
    %c0_i32 = arith.constant 0 : i32
    %c0_i32_0 = arith.constant 0 : i32
    %c0_i32_1 = arith.constant 0 : i32
    return %arg0, %c0_i32, %c0_i32_0 : i32, i32, i32
  }
  func.func @transform_1(%arg0: i32) -> (i32, i32, i32) {
    %c0_i32 = arith.constant 0 : i32
    %c0_i32_0 = arith.constant 0 : i32
    %c0_i32_1 = arith.constant 0 : i32
    %c0_i32_2 = arith.constant 0 : i32
    return %c0_i32, %c0_i32_0, %c0_i32_1 : i32, i32, i32
  }
  func.func @transform_2(%arg0: i32) -> (i32, i32) {
    %c0_i32 = arith.constant 0 : i32
    %c0_i32_0 = arith.constant 0 : i32
    %c0_i32_1 = arith.constant 0 : i32
    return %c0_i32, %c0_i32_0 : i32, i32
  }
  func.func @transform_3(%arg0: i32) -> (i32, i32) {
    %c0_i32 = arith.constant 0 : i32
    %c0_i32_0 = arith.constant 0 : i32
    %c0_i32_1 = arith.constant 0 : i32
    return %c0_i32, %c0_i32_0 : i32, i32
  }
  func.func @transform_4(%arg0: i32) -> (i32, i32, i32) {
    %c0_i32 = arith.constant 0 : i32
    %c0_i32_0 = arith.constant 0 : i32
    %c0_i32_1 = arith.constant 0 : i32
    %c0_i32_2 = arith.constant 0 : i32
    return %c0_i32, %c0_i32_0, %c0_i32_1 : i32, i32, i32
  }
  func.func @transform_5(%arg0: i32) -> (i32, i32) {
    %c0_i32 = arith.constant 0 : i32
    %c0_i32_0 = arith.constant 0 : i32
    %c0_i32_1 = arith.constant 0 : i32
    return %c0_i32, %c0_i32_0 : i32, i32
  }
  func.func @transform_6(%arg0: i32) -> (i32, i32) {
    %c0_i32 = arith.constant 0 : i32
    %c0_i32_0 = arith.constant 0 : i32
    %c0_i32_1 = arith.constant 0 : i32
    return %c0_i32, %c0_i32_0 : i32, i32
  }
  func.func @transform_7(%arg0: i32) -> (i32, i32) {
    %c0_i32 = arith.constant 0 : i32
    %c0_i32_0 = arith.constant 0 : i32
    %c0_i32_1 = arith.constant 0 : i32
    return %c0_i32, %c0_i32_0 : i32, i32
  }
  func.func @transform_8(%arg0: i32) -> (i32, i32, i32) {
    %c0_i32 = arith.constant 0 : i32
    %c0_i32_0 = arith.constant 0 : i32
    %c0_i32_1 = arith.constant 0 : i32
    return %arg0, %c0_i32, %c0_i32_0 : i32, i32, i32
  }
}

</mosaic_0001>

<llo_original>
// kernel: tpu_custom_call.1
$region0: #{tpu_custom_call.1}
  #allocation0 [shape = 'u32[]', space=smem, size = 0x4, offset = 0x4, fixed_abs, tag = 'smem constant byte address 0x4 - core index']
  #allocation1 [shape = 'u32[144,128]{1,0:T(1,128)}', space=vmem, size = 0x12000, scoped, tag = 'internal scratch']
  #allocation2 [shape = 'bf16[4,290]{1,0:T(4,128)(2,1)}', space=vmem, size = 0xc00, scoped, tag = 'scratch operand']
  #allocation3 [shape = 'bf16[8,290]{1,0:T(8,128)(2,1)}', space=vmem, size = 0x1800, scoped, tag = 'scratch operand']
  %s0 = inlined_call_operand.vmem [shape: f32[2,4,256], index: 0, kind: input, shape index: {}]
  %s1 = inlined_call_operand.vmem [shape: bf16[9,8,4], index: 1, kind: input, shape index: {}]
  %s2 = inlined_call_operand.vmem [shape: f32[8,1], index: 2, kind: input, shape index: {}]
  %s3 = inlined_call_operand.vmem [shape: f32[8,1], index: 3, kind: input, shape index: {}]
  %s4 = inlined_call_operand.vmem [shape: bf16[9,8,8], index: 4, kind: input, shape index: {}]
  %s5 = inlined_call_operand.vmem [shape: f32[8,1], index: 5, kind: input, shape index: {}]
  %s6 = inlined_call_operand.vmem [shape: f32[8,1], index: 6, kind: input, shape index: {}]
  %s7 = inlined_call_operand.vmem [shape: f32[2,256], index: 7, kind: input, shape index: {}]
  %s8 = inlined_call_operand.hbm [shape: f32[2,8,256], index: 8, kind: output, shape index: {}]
  %s9 = sld [smem:[#allocation0]]
  $region65: #{tpu_custom_call.1} parent=0
    _
  %s11 = ssub.s32 1, %s9
  %s12 = scalar_select 0, %s11, %s9
  $region1: #{tpu_custom_call.1} parent=0
    #allocation4 [shape = 'u8[16384]{0}', space=vmem, size = 0x4000, scoped, tag = 'output window, operand 0']
    #allocation5 [shape = 's32[2]{0}', space=sflag, size = 0x8, scoped, tag = 'scoped memory for tpu_custom_call.1']
    %13 = vsyncpa [#allocation5], 0
    %s14 = scalar_lea.sflag [#allocation5], 1
    %15 = vsyncpa %s14, 0
    loop: start=0, step=1, limit=4
    $region2: #{tpu_custom_call.1} parent=1 // loop_pre_header
      _
    $region3: #{tpu_custom_call.1} parent=1 // loop_header
      %s17 = sphi 0, %s21
      %p18 = scmp.ge.s32.totalorder %s17, 4
      %s27 = sphi 0, %s29
      %s30 = sphi 0, %s27
      %s31 = sphi 0, %s30
      %s47 = sphi 0, %s31
      %s51 = sphi 0, %s51
      %s53 = sphi 0, %s51
      %s54 = sphi 0, %s53
      %s68 = sphi 0, %s54
      %s72 = sphi 0, %s72
      %s74 = sphi 0, %s72
      %s75 = sphi 0, %s74
      %s89 = sphi 0, %s75
      %s93 = sphi 0, %s93
      %s95 = sphi 0, %s93
      %s96 = sphi 0, %s95
      %s110 = sphi 0, %s96
      %s114 = sphi 0, %s114
      %s116 = sphi 0, %s114
      %s117 = sphi 0, %s116
      %s131 = sphi 0, %s117
      %s135 = sphi 0, %s135
      %s137 = sphi 0, %s135
      %s138 = sphi 0, %s137
      %s152 = sphi 0, %s138
      %s156 = sphi 0, %s156
      %s158 = sphi 0, %s156
      %s159 = sphi 0, %s158
      %s173 = sphi 0, %s159
      %s177 = sphi 0, %s177
      %s179 = sphi 0, %s177
      %s180 = sphi 0, %s179
      %s194 = sphi 0, %s180
      %s200 = sphi 0, %s202
      %s203 = sphi 0, %s200
      %s204 = sphi 0, %s203
      %s220 = sphi 0, %s204
    $region4: #{tpu_custom_call.1} parent=1 // loop_header_branch
      %20 = sbr.rel (%p18) target = $region8
    $region5: #{tpu_custom_call.1} parent=1 // loop_body
      %s22 = ssub.s32 %s17, 1
      %s23 = ssub.s32 %s17, 2
      %s24 = sadd.s32 %s17, 1
      %s25 = ssub.s32 %s17, %s24
      %p26 = scmp.eq.s32.totalorder %s25, 0
      %s28 = sadd.s32 %s27, 1
      %s29 = scalar_select %p26, %s27, %s28
      %p32 = pneg %p26
      %p33 = scmp.eq.s32.totalorder %s17, 1
      %p34 = por %p32, %p33
      %p35 = scmp.ne.s32.totalorder %s27, %s30
      %p36 = scmp.eq.s32.totalorder %s17, 0
      %p37 = por %p35, %p36
      %p38 = scmp.ne.s32.totalorder %s27, %s30
      %p39 = scmp.eq.s32.totalorder %s22, 1
      %p40 = por %p38, %p39
      %p41 = scmp.ne.s32.totalorder %s30, %s31
      %p42 = scmp.eq.s32.totalorder %s22, 0
      %p43 = por %p41, %p42
      %p44 = scmp.ne.s32.totalorder %s30, %s31
      %p45 = scmp.eq.s32.totalorder %s23, 1
      %p46 = por %p44, %p45
      %p48 = scmp.ne.s32.totalorder %s31, %s47
      %p49 = scmp.eq.s32.totalorder %s23, 0
      %p50 = por %p48, %p49
      %s52 = sadd.s32 %s51, 1
      %p55 = scmp.eq.s32.totalorder %s17, 1
      %p56 = scmp.ne.s32.totalorder %s51, %s53
      %p57 = scmp.eq.s32.totalorder %s17, 0
      %p58 = por %p56, %p57
      %p59 = scmp.ne.s32.totalorder %s51, %s53
      %p60 = scmp.eq.s32.totalorder %s22, 1
      %p61 = por %p59, %p60
      %p62 = scmp.ne.s32.totalorder %s53, %s54
      %p63 = scmp.eq.s32.totalorder %s22, 0
      %p64 = por %p62, %p63
      %p65 = scmp.ne.s32.totalorder %s53, %s54
      %p66 = scmp.eq.s32.totalorder %s23, 1
      %p67 = por %p65, %p66
      %p69 = scmp.ne.s32.totalorder %s54, %s68
      %p70 = scmp.eq.s32.totalorder %s23, 0
      %p71 = por %p69, %p70
      %s73 = sadd.s32 %s72, 1
      %p76 = scmp.eq.s32.totalorder %s17, 1
      %p77 = scmp.ne.s32.totalorder %s72, %s74
      %p78 = scmp.eq.s32.totalorder %s17, 0
      %p79 = por %p77, %p78
      %p80 = scmp.ne.s32.totalorder %s72, %s74
      %p81 = scmp.eq.s32.totalorder %s22, 1
      %p82 = por %p80, %p81
      %p83 = scmp.ne.s32.totalorder %s74, %s75
      %p84 = scmp.eq.s32.totalorder %s22, 0
      %p85 = por %p83, %p84
      %p86 = scmp.ne.s32.totalorder %s74, %s75
      %p87 = scmp.eq.s32.totalorder %s23, 1
      %p88 = por %p86, %p87
      %p90 = scmp.ne.s32.totalorder %s75, %s89
      %p91 = scmp.eq.s32.totalorder %s23, 0
      %p92 = por %p90, %p91
      %s94 = sadd.s32 %s93, 1
      %p97 = scmp.eq.s32.totalorder %s17, 1
      %p98 = scmp.ne.s32.totalorder %s93, %s95
      %p99 = scmp.eq.s32.totalorder %s17, 0
      %p100 = por %p98, %p99
      %p101 = scmp.ne.s32.totalorder %s93, %s95
      %p102 = scmp.eq.s32.totalorder %s22, 1
      %p103 = por %p101, %p102
      %p104 = scmp.ne.s32.totalorder %s95, %s96
      %p105 = scmp.eq.s32.totalorder %s22, 0
      %p106 = por %p104, %p105
      %p107 = scmp.ne.s32.totalorder %s95, %s96
      %p108 = scmp.eq.s32.totalorder %s23, 1
      %p109 = por %p107, %p108
      %p111 = scmp.ne.s32.totalorder %s96, %s110
      %p112 = scmp.eq.s32.totalorder %s23, 0
      %p113 = por %p111, %p112
      %s115 = sadd.s32 %s114, 1
      %p118 = scmp.eq.s32.totalorder %s17, 1
      %p119 = scmp.ne.s32.totalorder %s114, %s116
      %p120 = scmp.eq.s32.totalorder %s17, 0
      %p121 = por %p119, %p120
      %p122 = scmp.ne.s32.totalorder %s114, %s116
      %p123 = scmp.eq.s32.totalorder %s22, 1
      %p124 = por %p122, %p123
      %p125 = scmp.ne.s32.totalorder %s116, %s117
      %p126 = scmp.eq.s32.totalorder %s22, 0
      %p127 = por %p125, %p126
      %p128 = scmp.ne.s32.totalorder %s116, %s117
      %p129 = scmp.eq.s32.totalorder %s23, 1
      %p130 = por %p128, %p129
      %p132 = scmp.ne.s32.totalorder %s117, %s131
      %p133 = scmp.eq.s32.totalorder %s23, 0
      %p134 = por %p132, %p133
      %s136 = sadd.s32 %s135, 1
      %p139 = scmp.eq.s32.totalorder %s17, 1
      %p140 = scmp.ne.s32.totalorder %s135, %s137
      %p141 = scmp.eq.s32.totalorder %s17, 0
      %p142 = por %p140, %p141
      %p143 = scmp.ne.s32.totalorder %s135, %s137
      %p144 = scmp.eq.s32.totalorder %s22, 1
      %p145 = por %p143, %p144
      %p146 = scmp.ne.s32.totalorder %s137, %s138
      %p147 = scmp.eq.s32.totalorder %s22, 0
      %p148 = por %p146, %p147
      %p149 = scmp.ne.s32.totalorder %s137, %s138
      %p150 = scmp.eq.s32.totalorder %s23, 1
      %p151 = por %p149, %p150
      %p153 = scmp.ne.s32.totalorder %s138, %s152
      %p154 = scmp.eq.s32.totalorder %s23, 0
      %p155 = por %p153, %p154
      %s157 = sadd.s32 %s156, 1
      %p160 = scmp.eq.s32.totalorder %s17, 1
      %p161 = scmp.ne.s32.totalorder %s156, %s158
      %p162 = scmp.eq.s32.totalorder %s17, 0
      %p163 = por %p161, %p162
      %p164 = scmp.ne.s32.totalorder %s156, %s158
      %p165 = scmp.eq.s32.totalorder %s22, 1
      %p166 = por %p164, %p165
      %p167 = scmp.ne.s32.totalorder %s158, %s159
      %p168 = scmp.eq.s32.totalorder %s22, 0
      %p169 = por %p167, %p168
      %p170 = scmp.ne.s32.totalorder %s158, %s159
      %p171 = scmp.eq.s32.totalorder %s23, 1
      %p172 = por %p170, %p171
      %p174 = scmp.ne.s32.totalorder %s159, %s173
      %p175 = scmp.eq.s32.totalorder %s23, 0
      %p176 = por %p174, %p175
      %s178 = sadd.s32 %s177, 1
      %p181 = scmp.eq.s32.totalorder %s17, 1
      %p182 = scmp.ne.s32.totalorder %s177, %s179
      %p183 = scmp.eq.s32.totalorder %s17, 0
      %p184 = por %p182, %p183
      %p185 = scmp.ne.s32.totalorder %s177, %s179
      %p186 = scmp.eq.s32.totalorder %s22, 1
      %p187 = por %p185, %p186
      %p188 = scmp.ne.s32.totalorder %s179, %s180
      %p189 = scmp.eq.s32.totalorder %s22, 0
      %p190 = por %p188, %p189
      %p191 = scmp.ne.s32.totalorder %s179, %s180
      %p192 = scmp.eq.s32.totalorder %s23, 1
      %p193 = por %p191, %p192
      %p195 = scmp.ne.s32.totalorder %s180, %s194
      %p196 = scmp.eq.s32.totalorder %s23, 0
      %p197 = por %p195, %p196
      %s198 = ssub.s32 %s17, %s24
      %p199 = scmp.eq.s32.totalorder %s198, 0
      %s201 = sadd.s32 %s200, 1
      %s202 = scalar_select %p199, %s200, %s201
      %p205 = pneg %p199
      %p206 = scmp.eq.s32.totalorder %s17, 1
      %p207 = por %p205, %p206
      %p208 = scmp.ne.s32.totalorder %s200, %s203
      %p209 = scmp.eq.s32.totalorder %s17, 0
      %p210 = por %p208, %p209
      %p211 = scmp.ne.s32.totalorder %s200, %s203
      %p212 = scmp.eq.s32.totalorder %s22, 1
      %p213 = por %p211, %p212
      %p214 = scmp.ne.s32.totalorder %s203, %s204
      %p215 = scmp.eq.s32.totalorder %s22, 0
      %p216 = por %p214, %p215
      %p217 = scmp.ne.s32.totalorder %s203, %s204
      %p218 = scmp.eq.s32.totalorder %s23, 1
      %p219 = por %p217, %p218
      %p221 = scmp.ne.s32.totalorder %s204, %s220
      %p222 = scmp.eq.s32.totalorder %s23, 0
      %p223 = por %p221, %p222
      %p224 = scmp.le.s32.totalorder 1, %s17
      %p225 = scmp.lt.s32.totalorder %s17, 3
      %p226 = pnand %p224, %p225
      %p227 = pneg %p226
      // Predicated region
      $region9: #{tpu_custom_call.1} parent=5 // pred_check
        _
      $region10: #{tpu_custom_call.1} parent=5 // pred_check_branch
        %229 = sbr.rel (%p226) target = $region12
      $region11: #{tpu_custom_call.1} parent=5 // pred_region
        %s230 = ssub.s32 %s17, 1
        // Predicated region
        $region13: #{tpu_custom_call.1} parent=11 // pred_check
          %p231 = pneg %p64
        $region14: #{tpu_custom_call.1} parent=11 // pred_check_branch
          %233 = sbr.rel (%p231) target = $region16
        $region15: #{tpu_custom_call.1} parent=11 // pred_region
          _
        $region16: #{tpu_custom_call.1} parent=11 // pred_fallthru
          _
        // Predicated region
        $region17: #{tpu_custom_call.1} parent=11 // pred_check
          %p234 = pneg %p85
        $region18: #{tpu_custom_call.1} parent=11 // pred_check_branch
          %236 = sbr.rel (%p234) target = $region20
        $region19: #{tpu_custom_call.1} parent=11 // pred_region
          _
        $region20: #{tpu_custom_call.1} parent=11 // pred_fallthru
          _
        // Predicated region
        $region21: #{tpu_custom_call.1} parent=11 // pred_check
          %p237 = pneg %p106
        $region22: #{tpu_custom_call.1} parent=11 // pred_check_branch
          %239 = sbr.rel (%p237) target = $region24
        $region23: #{tpu_custom_call.1} parent=11 // pred_region
          _
        $region24: #{tpu_custom_call.1} parent=11 // pred_fallthru
          _
        // Predicated region
        $region25: #{tpu_custom_call.1} parent=11 // pred_check
          %p240 = pneg %p127
        $region26: #{tpu_custom_call.1} parent=11 // pred_check_branch
          %242 = sbr.rel (%p240) target = $region28
        $region27: #{tpu_custom_call.1} parent=11 // pred_region
          _
        $region28: #{tpu_custom_call.1} parent=11 // pred_fallthru
          _
        // Predicated region
        $region29: #{tpu_custom_call.1} parent=11 // pred_check
          %p243 = pneg %p148
        $region30: #{tpu_custom_call.1} parent=11 // pred_check_branch
          %245 = sbr.rel (%p243) target = $region32
        $region31: #{tpu_custom_call.1} parent=11 // pred_region
          _
        $region32: #{tpu_custom_call.1} parent=11 // pred_fallthru
          _
        // Predicated region
        $region33: #{tpu_custom_call.1} parent=11 // pred_check
          %p246 = pneg %p169
        $region34: #{tpu_custom_call.1} parent=11 // pred_check_branch
          %248 = sbr.rel (%p246) target = $region36
        $region35: #{tpu_custom_call.1} parent=11 // pred_region
          _
        $region36: #{tpu_custom_call.1} parent=11 // pred_fallthru
          _
        // Predicated region
        $region37: #{tpu_custom_call.1} parent=11 // pred_check
          %p249 = pneg %p190
        $region38: #{tpu_custom_call.1} parent=11 // pred_check_branch
          %251 = sbr.rel (%p249) target = $region40
        $region39: #{tpu_custom_call.1} parent=11 // pred_region
          _
        $region40: #{tpu_custom_call.1} parent=11 // pred_fallthru
          _
      $region12: #{tpu_custom_call.1} parent=5 // pred_fallthru
        _
      %p252 = scmp.lt.s32.totalorder %s17, 2
      // Predicated region
      $region41: #{tpu_custom_call.1} parent=5 // pred_check
        %p253 = pneg %p252
      $region42: #{tpu_custom_call.1} parent=5 // pred_check_branch
        %255 = sbr.rel (%p253) target = $region44
      $region43: #{tpu_custom_call.1} parent=5 // pred_region
        // Predicated region
        $region45: #{tpu_custom_call.1} parent=43 // pred_check
          %p256 = pneg %p37
        $region46: #{tpu_custom_call.1} parent=43 // pred_check_branch
          %258 = sbr.rel (%p256) target = $region48
        $region47: #{tpu_custom_call.1} parent=43 // pred_region
          %p259 = scmp.lt.s32.totalorder %s17, 1
          %s260 = scalar_select %p259, %s17, 1
          %s261 = smul.addr %s260, 2
          %s262 = smul.addr %s261, 4
          %s263 = scalar_lea.vmem %s0, %s262
        $region48: #{tpu_custom_call.1} parent=43 // pred_fallthru
          _
      $region44: #{tpu_custom_call.1} parent=5 // pred_fallthru
        _
      %p264 = scmp.le.s32.totalorder 1, %s17
      %p265 = scmp.lt.s32.totalorder %s17, 3
      %p266 = pnand %p264, %p265
      %p267 = pneg %p266
      // Predicated region
      $region49: #{tpu_custom_call.1} parent=5 // pred_check
        _
      $region50: #{tpu_custom_call.1} parent=5 // pred_check_branch
        %269 = sbr.rel (%p266) target = $region52
      $region51: #{tpu_custom_call.1} parent=5 // pred_region
        %s270 = ssub.s32 %s17, 1
        %p271 = scmp.lt.s32.totalorder %s22, 1
        %s272 = scalar_select %p271, %s22, 1
        %s273 = smul.addr %s272, 2
        %s274 = smul.addr %s273, 4
        %s275 = scalar_lea.vmem %s0, %s274
        %p276 = pneg %p43
        %p277 = pneg %p40
        %p278 = pneg %p64
        %p279 = pneg %p61
        %p280 = pneg %p85
        %p281 = pneg %p82
        %p282 = pneg %p106
        %p283 = pneg %p103
        %p284 = pneg %p127
        %p285 = pneg %p124
        %p286 = pneg %p148
        %p287 = pneg %p145
        %p288 = pneg %p169
        %p289 = pneg %p166
        %p290 = pneg %p190
        %p291 = pneg %p187
        %p292 = pneg %p216
        %p293 = pneg %p213
        %s294 = sand.u32 %s203, 1
        %s295 = scalar_lea.sflag [#allocation5], %s294
        %s296 = sand.u32 %s203, 1
        %s297 = smul.addr %s296, 16
        %s298 = scalar_lea.vmem [#allocation4], %s297
        %p299 = scmp.lt.s32.totalorder %s22, 1
        %s300 = scalar_select %p299, %s22, 1
        %s301 = smul.addr %s300, 2
        %s302 = smul.addr %s301, 4
        %s303 = scalar_lea.vmem %s0, %s302
        %v305 = vld [vmem:[%s7] ss:$2 sm:$0x3]
        %s306 = scalar_lea.vmem %s7, 1
        %v307 = vld [vmem:[%s306] ss:$2 sm:$0x3]
        %vm308 = vcmask 132096
        %309 = vst.msk [vmem:[#allocation2] sm:$0x3] %vm308, 0
        %vm310 = vcmask 271496
        %311 = vst.msk [vmem:[#allocation2 + $0x4] sm:$0x3] %vm310, 0
        %v312 = vld [vmem:[%s303] sm:$0xff]
        %v314 = vcombine.high %v312, %v312
        %v316 = vpack.c.bf16 %v312, %v312
        %v317 = vpack.c.bf16 %v314, %v314
        %v320 = vcombine.low %v316, %v317
        %v322 = vunpack.c.l.s4 1983009808
        %v323 = vunpack.c.0.s8 %v322
        %v324 = vlaneseq
        %v325 = vshrl.u32 %v324, 7
        %v326 = vsub.s32 %v323, %v325
        %v327 = vrot.slane %v320, %v326
        %328 = vrot.lane.b32.xlu0 %v327, 17
        %v329 = vpop.permute.xlu0 %328
        %v330 = vrot.slane %v329, 6
        %vm331 = vcmask 138240
        %v332 = vsel %vm331, %v330, %v329
        %vm334 = vcmask 1041544
        %vm335 = vcmask 1043458
        %vm336 = vmor %vm335, %vm334
        %vm337 = vcmask 136196
        %vm338 = vmor %vm337, %vm336
        %339 = vst.msk [vmem:[#allocation2] sm:$0x3f] %vm338, %v332
        %s340 = scalar_lea.vmem %s1, 4
        %v341 = vld [vmem:[%s340] sm:$0xf]
        %v342 = vld [vmem:[#allocation2] sm:$0x3f]
        %s343 = scalar_lea.vmem %s1, 16
        %v344 = vld [vmem:[%s343] sm:$0xf]
        %v346 = vcombine.high %v342, %v342
        %v348 = vunpack.c.l.s4 1983009808
        %v349 = vunpack.c.0.s8 %v348
        %v350 = vlaneseq
        %v351 = vshrl.u32 %v350, 7
        %v352 = vsub.s32 %v349, %v351
        %v353 = vrot.slane %v342, %v352
        %v355 = vunpack.c.l.s4 1983009808
        %v356 = vunpack.c.0.s8 %v355
        %v357 = vlaneseq
        %v358 = vshrl.u32 %v357, 7
        %v359 = vsub.s32 %v356, %v358
        %v360 = vrot.slane %v346, %v359
        %v361 = vcombine.high %v353, %v353
        %362 = vrot.lane.b32.xlu0 %v353, 111
        %v363 = vpop.permute.xlu0 %362
        %364 = vrot.lane.b32.xlu0 %v361, 111
        %v365 = vpop.permute.xlu0 %364
        %366 = vrot.lane.b32.xlu0 %v360, 111
        %v367 = vpop.permute.xlu0 %366
        %vm368 = vcmask 908288
        %v369 = vsel %vm368, %v363, %v365
        %v370 = vsel %vm368, %v365, %v367
        %vm371 = vcmask 31744
        %v373 = vsel %vm371, %v344, 0
        %vm375 = vcmask 1041408
        %v377 = vsel %vm375, %v369, 0
        %v380 = vsel %vm375, %v370, 0
        %382 = vmatprep.subr.bf16.mxu0 %v380
        %383 = vmatpush1.bf16.msra.mxu0 %v377
        %384 = vmatprep.subr.bf16.mxu0 0
        %385 = vmatpush1.bf16.msra.mxu0 0
        %386 = vmatprep.subr.bf16.mxu0 0
        %387 = vmatpush1.bf16.msra.mxu0 0
        %388 = vmatprep.subr.bf16.mxu0 0
        %389 = vmatpush1.bf16.msra.mxu0 0
        %390 = vmatprep.subr.bf16.mxu0 0
        %391 = vmatpush1.bf16.msra.mxu0 0
        %392 = vmatprep.subr.bf16.mxu0 0
        %393 = vmatpush1.bf16.msra.mxu0 0
        %394 = vmatprep.subr.bf16.mxu0 0
        %395 = vmatpush1.bf16.msra.mxu0 0
        %396 = vmatprep.subr.bf16.mxu0 0
        %397 = vmatpush1.bf16.msra.mxu0 0
        %398 = vmatprep.subr.bf16.mxu0 0
        %399 = vmatpush1.bf16.msra.mxu0 0
        %400 = vmatprep.subr.bf16.mxu0 0
        %401 = vmatpush1.bf16.msra.mxu0 0
        %402 = vmatprep.subr.bf16.mxu0 0
        %403 = vmatpush1.bf16.msra.mxu0 0
        %404 = vmatprep.subr.bf16.mxu0 0
        %405 = vmatpush1.bf16.msra.mxu0 0
        %406 = vmatprep.subr.bf16.mxu0 0
        %407 = vmatpush1.bf16.msra.mxu0 0
        %408 = vmatprep.subr.bf16.mxu0 0
        %409 = vmatpush1.bf16.msra.mxu0 0
        %410 = vmatprep.subr.bf16.mxu0 0
        %411 = vmatpush1.bf16.msra.mxu0 0
        %412 = vmatprep.subr.bf16.mxu0 0
        %413 = vmatpush1.bf16.msra.mxu0 0
        %414 = vmatprep.mubr.bf16.mxu0 0
        %415 = vmatmul.mubr.bf16.gmra.mrb[0].mxu0 %v373
        %v416 = vpop.f32.mrb[0].mxu0
        %v417 = vadd.f32 0.0, %v416
        %v418 = vpop.f32.mrb[0].mxu0
        %v419 = vadd.f32 0.0, %v418
        %v420 = vpop.f32.mrb[0].mxu0
        %v421 = vpop.f32.mrb[0].mxu0
        %422 = vdwg.mxu0
        %423 = vrot.lane.b32.xlu0 %v353, 127
        %v424 = vpop.permute.xlu0 %423
        %425 = vrot.lane.b32.xlu0 %v361, 127
        %v426 = vpop.permute.xlu0 %425
        %427 = vrot.lane.b32.xlu0 %v360, 127
        %v428 = vpop.permute.xlu0 %427
        %vm429 = vcmask 1039360
        %v430 = vsel %vm429, %v424, %v426
        %v431 = vsel %vm429, %v426, %v428
        %v433 = vsel %vm371, %v341, 0
        %v436 = vsel %vm375, %v430, 0
        %v439 = vsel %vm375, %v431, 0
        %441 = vmatprep.subr.bf16.mxu0 %v439
        %442 = vmatpush1.bf16.msra.mxu0 %v436
        %443 = vmatprep.subr.bf16.mxu0 0
        %444 = vmatpush1.bf16.msra.mxu0 0
        %445 = vmatprep.subr.bf16.mxu0 0
        %446 = vmatpush1.bf16.msra.mxu0 0
        %447 = vmatprep.subr.bf16.mxu0 0
        %448 = vmatpush1.bf16.msra.mxu0 0
        %449 = vmatprep.subr.bf16.mxu0 0
        %450 = vmatpush1.bf16.msra.mxu0 0
        %451 = vmatprep.subr.bf16.mxu0 0
        %452 = vmatpush1.bf16.msra.mxu0 0
        %453 = vmatprep.subr.bf16.mxu0 0
        %454 = vmatpush1.bf16.msra.mxu0 0
        %455 = vmatprep.subr.bf16.mxu0 0
        %456 = vmatpush1.bf16.msra.mxu0 0
        %457 = vmatprep.subr.bf16.mxu0 0
        %458 = vmatpush1.bf16.msra.mxu0 0
        %459 = vmatprep.subr.bf16.mxu0 0
        %460 = vmatpush1.bf16.msra.mxu0 0
        %461 = vmatprep.subr.bf16.mxu0 0
        %462 = vmatpush1.bf16.msra.mxu0 0
        %463 = vmatprep.subr.bf16.mxu0 0
        %464 = vmatpush1.bf16.msra.mxu0 0
        %465 = vmatprep.subr.bf16.mxu0 0
        %466 = vmatpush1.bf16.msra.mxu0 0
        %467 = vmatprep.subr.bf16.mxu0 0
        %468 = vmatpush1.bf16.msra.mxu0 0
        %469 = vmatprep.subr.bf16.mxu0 0
        %470 = vmatpush1.bf16.msra.mxu0 0
        %471 = vmatprep.subr.bf16.mxu0 0
        %472 = vmatpush1.bf16.msra.mxu0 0
        %473 = vmatprep.mubr.bf16.mxu0 0
        %474 = vmatmul.mubr.bf16.gmra.mrb[0].mxu0 %v433
        %v475 = vpop.f32.mrb[0].mxu0
        %v476 = vadd.f32 %v417, %v475
        %v477 = vpop.f32.mrb[0].mxu0
        %v478 = vadd.f32 %v419, %v477
        %v479 = vpop.f32.mrb[0].mxu0
        %v480 = vpop.f32.mrb[0].mxu0
        %481 = vdwg.mxu0
        %s482 = scalar_lea.vmem %s1, 28
        %v483 = vld [vmem:[%s482] sm:$0xf]
        %v484 = vld [vmem:[#allocation2] sm:$0x3f]
        %v486 = vcombine.high %v484, %v484
        %v488 = vunpack.c.l.s4 1983009808
        %v489 = vunpack.c.0.s8 %v488
        %v490 = vlaneseq
        %v491 = vshrl.u32 %v490, 7
        %v492 = vsub.s32 %v489, %v491
        %v493 = vrot.slane %v484, %v492
        %v495 = vunpack.c.l.s4 1983009808
        %v496 = vunpack.c.0.s8 %v495
        %v497 = vlaneseq
        %v498 = vshrl.u32 %v497, 7
        %v499 = vsub.s32 %v496, %v498
        %v500 = vrot.slane %v486, %v499
        %v501 = vcombine.high %v493, %v493
        %502 = vrot.lane.b32.xlu0 %v493, 95
        %v503 = vpop.permute.xlu0 %502
        %504 = vrot.lane.b32.xlu0 %v501, 95
        %v505 = vpop.permute.xlu0 %504
        %506 = vrot.lane.b32.xlu0 %v500, 95
        %v507 = vpop.permute.xlu0 %506
        %vm508 = vcmask 777216
        %v509 = vsel %vm508, %v503, %v505
        %v510 = vsel %vm508, %v505, %v507
        %v512 = vsel %vm371, %v483, 0
        %v515 = vsel %vm375, %v509, 0
        %v518 = vsel %vm375, %v510, 0
        %520 = vmatprep.subr.bf16.mxu0 %v518
        %521 = vmatpush1.bf16.msra.mxu0 %v515
        %522 = vmatprep.subr.bf16.mxu0 0
        %523 = vmatpush1.bf16.msra.mxu0 0
        %524 = vmatprep.subr.bf16.mxu0 0
        %525 = vmatpush1.bf16.msra.mxu0 0
        %526 = vmatprep.subr.bf16.mxu0 0
        %527 = vmatpush1.bf16.msra.mxu0 0
        %528 = vmatprep.subr.bf16.mxu0 0
        %529 = vmatpush1.bf16.msra.mxu0 0
        %530 = vmatprep.subr.bf16.mxu0 0
        %531 = vmatpush1.bf16.msra.mxu0 0
        %532 = vmatprep.subr.bf16.mxu0 0
        %533 = vmatpush1.bf16.msra.mxu0 0
        %534 = vmatprep.subr.bf16.mxu0 0
        %535 = vmatpush1.bf16.msra.mxu0 0
        %536 = vmatprep.subr.bf16.mxu0 0
        %537 = vmatpush1.bf16.msra.mxu0 0
        %538 = vmatprep.subr.bf16.mxu0 0
        %539 = vmatpush1.bf16.msra.mxu0 0
        %540 = vmatprep.subr.bf16.mxu0 0
        %541 = vmatpush1.bf16.msra.mxu0 0
        %542 = vmatprep.subr.bf16.mxu0 0
        %543 = vmatpush1.bf16.msra.mxu0 0
        %544 = vmatprep.subr.bf16.mxu0 0
        %545 = vmatpush1.bf16.msra.mxu0 0
        %546 = vmatprep.subr.bf16.mxu0 0
        %547 = vmatpush1.bf16.msra.mxu0 0
        %548 = vmatprep.subr.bf16.mxu0 0
        %549 = vmatpush1.bf16.msra.mxu0 0
        %550 = vmatprep.subr.bf16.mxu0 0
        %551 = vmatpush1.bf16.msra.mxu0 0
        %552 = vmatprep.mubr.bf16.mxu0 0
        %553 = vmatmul.mubr.bf16.gmra.mrb[0].mxu0 %v512
        %v554 = vpop.f32.mrb[0].mxu0
        %v555 = vadd.f32 0.0, %v554
        %v556 = vpop.f32.mrb[0].mxu0
        %v557 = vadd.f32 0.0, %v556
        %v558 = vpop.f32.mrb[0].mxu0
        %v559 = vpop.f32.mrb[0].mxu0
        %560 = vdwg.mxu0
        %v561 = vadd.f32 %v476, %v555
        %v562 = vadd.f32 %v478, %v557
        %v563 = vld [vmem:[%s1] sm:$0xf]
        %v564 = vld [vmem:[#allocation2] sm:$0xf]
        %s565 = scalar_lea.vmem %s1, 12
        %v566 = vld [vmem:[%s565] sm:$0xf]
        %v567 = vld [vmem:[#allocation2] sm:$0x3f]
        %v569 = vcombine.high %v567, %v567
        %v571 = vunpack.c.l.s4 1983009808
        %v572 = vunpack.c.0.s8 %v571
        %v573 = vlaneseq
        %v574 = vshrl.u32 %v573, 7
        %v575 = vsub.s32 %v572, %v574
        %v576 = vrot.slane %v567, %v575
        %v578 = vunpack.c.l.s4 1983009808
        %v579 = vunpack.c.0.s8 %v578
        %v580 = vlaneseq
        %v581 = vshrl.u32 %v580, 7
        %v582 = vsub.s32 %v579, %v581
        %v583 = vrot.slane %v569, %v582
        %v584 = vcombine.high %v576, %v576
        %585 = vrot.lane.b32.xlu0 %v576, 112
        %v586 = vpop.permute.xlu0 %585
        %587 = vrot.lane.b32.xlu0 %v584, 112
        %v588 = vpop.permute.xlu0 %587
        %589 = vrot.lane.b32.xlu0 %v583, 112
        %v590 = vpop.permute.xlu0 %589
        %vm591 = vcmask 916480
        %v592 = vsel %vm591, %v586, %v588
        %v593 = vsel %vm591, %v588, %v590
        %v595 = vsel %vm371, %v566, 0
        %v598 = vsel %vm375, %v592, 0
        %v601 = vsel %vm375, %v593, 0
        %603 = vmatprep.subr.bf16.mxu0 %v601
        %604 = vmatpush1.bf16.msra.mxu0 %v598
        %605 = vmatprep.subr.bf16.mxu0 0
        %606 = vmatpush1.bf16.msra.mxu0 0
        %607 = vmatprep.subr.bf16.mxu0 0
        %608 = vmatpush1.bf16.msra.mxu0 0
        %609 = vmatprep.subr.bf16.mxu0 0
        %610 = vmatpush1.bf16.msra.mxu0 0
        %611 = vmatprep.subr.bf16.mxu0 0
        %612 = vmatpush1.bf16.msra.mxu0 0
        %613 = vmatprep.subr.bf16.mxu0 0
        %614 = vmatpush1.bf16.msra.mxu0 0
        %615 = vmatprep.subr.bf16.mxu0 0
        %616 = vmatpush1.bf16.msra.mxu0 0
        %617 = vmatprep.subr.bf16.mxu0 0
        %618 = vmatpush1.bf16.msra.mxu0 0
        %619 = vmatprep.subr.bf16.mxu0 0
        %620 = vmatpush1.bf16.msra.mxu0 0
        %621 = vmatprep.subr.bf16.mxu0 0
        %622 = vmatpush1.bf16.msra.mxu0 0
        %623 = vmatprep.subr.bf16.mxu0 0
        %624 = vmatpush1.bf16.msra.mxu0 0
        %625 = vmatprep.subr.bf16.mxu0 0
        %626 = vmatpush1.bf16.msra.mxu0 0
        %627 = vmatprep.subr.bf16.mxu0 0
        %628 = vmatpush1.bf16.msra.mxu0 0
        %629 = vmatprep.subr.bf16.mxu0 0
        %630 = vmatpush1.bf16.msra.mxu0 0
        %631 = vmatprep.subr.bf16.mxu0 0
        %632 = vmatpush1.bf16.msra.mxu0 0
        %633 = vmatprep.subr.bf16.mxu0 0
        %634 = vmatpush1.bf16.msra.mxu0 0
        %635 = vmatprep.mubr.bf16.mxu0 0
        %636 = vmatmul.mubr.bf16.gmra.mrb[0].mxu0 %v595
        %v637 = vpop.f32.mrb[0].mxu0
        %v638 = vadd.f32 0.0, %v637
        %v639 = vpop.f32.mrb[0].mxu0
        %v640 = vadd.f32 0.0, %v639
        %v641 = vpop.f32.mrb[0].mxu0
        %v642 = vpop.f32.mrb[0].mxu0
        %643 = vdwg.mxu0
        %v646 = vunpack.c.l.s4 1983009808
        %v647 = vunpack.c.0.s8 %v646
        %v648 = vlaneseq
        %v649 = vshrl.u32 %v648, 7
        %v650 = vsub.s32 %v647, %v649
        %v651 = vrot.slane %v564, %v650
        %v652 = vcombine.high %v651, %v651
        %v654 = vsel %vm371, %v563, 0
        %v657 = vsel %vm375, %v651, 0
        %v660 = vsel %vm375, %v652, 0
        %662 = vmatprep.subr.bf16.mxu0 %v660
        %663 = vmatpush1.bf16.msra.mxu0 %v657
        %664 = vmatprep.subr.bf16.mxu0 0
        %665 = vmatpush1.bf16.msra.mxu0 0
        %666 = vmatprep.subr.bf16.mxu0 0
        %667 = vmatpush1.bf16.msra.mxu0 0
        %668 = vmatprep.subr.bf16.mxu0 0
        %669 = vmatpush1.bf16.msra.mxu0 0
        %670 = vmatprep.subr.bf16.mxu0 0
        %671 = vmatpush1.bf16.msra.mxu0 0
        %672 = vmatprep.subr.bf16.mxu0 0
        %673 = vmatpush1.bf16.msra.mxu0 0
        %674 = vmatprep.subr.bf16.mxu0 0
        %675 = vmatpush1.bf16.msra.mxu0 0
        %676 = vmatprep.subr.bf16.mxu0 0
        %677 = vmatpush1.bf16.msra.mxu0 0
        %678 = vmatprep.subr.bf16.mxu0 0
        %679 = vmatpush1.bf16.msra.mxu0 0
        %680 = vmatprep.subr.bf16.mxu0 0
        %681 = vmatpush1.bf16.msra.mxu0 0
        %682 = vmatprep.subr.bf16.mxu0 0
        %683 = vmatpush1.bf16.msra.mxu0 0
        %684 = vmatprep.subr.bf16.mxu0 0
        %685 = vmatpush1.bf16.msra.mxu0 0
        %686 = vmatprep.subr.bf16.mxu0 0
        %687 = vmatpush1.bf16.msra.mxu0 0
        %688 = vmatprep.subr.bf16.mxu0 0
        %689 = vmatpush1.bf16.msra.mxu0 0
        %690 = vmatprep.subr.bf16.mxu0 0
        %691 = vmatpush1.bf16.msra.mxu0 0
        %692 = vmatprep.subr.bf16.mxu0 0
        %693 = vmatpush1.bf16.msra.mxu0 0
        %694 = vmatprep.mubr.bf16.mxu0 0
        %695 = vmatmul.mubr.bf16.gmra.mrb[0].mxu0 %v654
        %v696 = vpop.f32.mrb[0].mxu0
        %v697 = vadd.f32 %v638, %v696
        %v698 = vpop.f32.mrb[0].mxu0
        %v699 = vadd.f32 %v640, %v698
        %v700 = vpop.f32.mrb[0].mxu0
        %v701 = vpop.f32.mrb[0].mxu0
        %702 = vdwg.mxu0
        %s703 = scalar_lea.vmem %s1, 24
        %v704 = vld [vmem:[%s703] sm:$0xf]
        %v705 = vld [vmem:[#allocation2] sm:$0x3f]
        %v707 = vcombine.high %v705, %v705
        %v709 = vunpack.c.l.s4 1983009808
        %v710 = vunpack.c.0.s8 %v709
        %v711 = vlaneseq
        %v712 = vshrl.u32 %v711, 7
        %v713 = vsub.s32 %v710, %v712
        %v714 = vrot.slane %v705, %v713
        %v716 = vunpack.c.l.s4 1983009808
        %v717 = vunpack.c.0.s8 %v716
        %v718 = vlaneseq
        %v719 = vshrl.u32 %v718, 7
        %v720 = vsub.s32 %v717, %v719
        %v721 = vrot.slane %v707, %v720
        %v722 = vcombine.high %v714, %v714
        %723 = vrot.lane.b32.xlu0 %v714, 96
        %v724 = vpop.permute.xlu0 %723
        %725 = vrot.lane.b32.xlu0 %v722, 96
        %v726 = vpop.permute.xlu0 %725
        %727 = vrot.lane.b32.xlu0 %v721, 96
        %v728 = vpop.permute.xlu0 %727
        %vm729 = vcmask 785408
        %v730 = vsel %vm729, %v724, %v726
        %v731 = vsel %vm729, %v726, %v728
        %v733 = vsel %vm371, %v704, 0
        %v736 = vsel %vm375, %v730, 0
        %v739 = vsel %vm375, %v731, 0
        %741 = vmatprep.subr.bf16.mxu0 %v739
        %742 = vmatpush1.bf16.msra.mxu0 %v736
        %743 = vmatprep.subr.bf16.mxu0 0
        %744 = vmatpush1.bf16.msra.mxu0 0
        %745 = vmatprep.subr.bf16.mxu0 0
        %746 = vmatpush1.bf16.msra.mxu0 0
        %747 = vmatprep.subr.bf16.mxu0 0
        %748 = vmatpush1.bf16.msra.mxu0 0
        %749 = vmatprep.subr.bf16.mxu0 0
        %750 = vmatpush1.bf16.msra.mxu0 0
        %751 = vmatprep.subr.bf16.mxu0 0
        %752 = vmatpush1.bf16.msra.mxu0 0
        %753 = vmatprep.subr.bf16.mxu0 0
        %754 = vmatpush1.bf16.msra.mxu0 0
        %755 = vmatprep.subr.bf16.mxu0 0
        %756 = vmatpush1.bf16.msra.mxu0 0
        %757 = vmatprep.subr.bf16.mxu0 0
        %758 = vmatpush1.bf16.msra.mxu0 0
        %759 = vmatprep.subr.bf16.mxu0 0
        %760 = vmatpush1.bf16.msra.mxu0 0
        %761 = vmatprep.subr.bf16.mxu0 0
        %762 = vmatpush1.bf16.msra.mxu0 0
        %763 = vmatprep.subr.bf16.mxu0 0
        %764 = vmatpush1.bf16.msra.mxu0 0
        %765 = vmatprep.subr.bf16.mxu0 0
        %766 = vmatpush1.bf16.msra.mxu0 0
        %767 = vmatprep.subr.bf16.mxu0 0
        %768 = vmatpush1.bf16.msra.mxu0 0
        %769 = vmatprep.subr.bf16.mxu0 0
        %770 = vmatpush1.bf16.msra.mxu0 0
        %771 = vmatprep.subr.bf16.mxu0 0
        %772 = vmatpush1.bf16.msra.mxu0 0
        %773 = vmatprep.mubr.bf16.mxu0 0
        %774 = vmatmul.mubr.bf16.gmra.mrb[0].mxu0 %v733
        %v775 = vpop.f32.mrb[0].mxu0
        %v776 = vadd.f32 0.0, %v775
        %v777 = vpop.f32.mrb[0].mxu0
        %v778 = vadd.f32 0.0, %v777
        %v779 = vpop.f32.mrb[0].mxu0
        %v780 = vpop.f32.mrb[0].mxu0
        %781 = vdwg.mxu0
        %v782 = vadd.f32 %v697, %v776
        %v783 = vadd.f32 %v699, %v778
        %v785 = vlaneseq
        %v786 = vshrl.u32 %v785, 7
        %v787 = vsub.s32 0, %v786
        %v788 = vrot.slane %v305, %v787
        %v789 = vlaneseq
        %v790 = vshrl.u32 %v789, 7
        %v791 = vsub.s32 1, %v790
        %v792 = vrot.slane %v305, %v791
        %v795 = vmul.f32 %v788, %v782
        %v796 = vmul.f32 %v792, %v783
        %v797 = vadd.f32 %v561, %v795
        %v798 = vadd.f32 %v562, %v796
        %s799 = scalar_lea.vmem %s1, 8
        %v800 = vld [vmem:[%s799] sm:$0xf]
        %v801 = vld [vmem:[#allocation2] sm:$0x3f]
        %s802 = scalar_lea.vmem %s1, 20
        %v803 = vld [vmem:[%s802] sm:$0xf]
        %v805 = vcombine.high %v801, %v801
        %v807 = vunpack.c.l.s4 1983009808
        %v808 = vunpack.c.0.s8 %v807
        %v809 = vlaneseq
        %v810 = vshrl.u32 %v809, 7
        %v811 = vsub.s32 %v808, %v810
        %v812 = vrot.slane %v801, %v811
        %v814 = vunpack.c.l.s4 1983009808
        %v815 = vunpack.c.0.s8 %v814
        %v816 = vlaneseq
        %v817 = vshrl.u32 %v816, 7
        %v818 = vsub.s32 %v815, %v817
        %v819 = vrot.slane %v805, %v818
        %v820 = vcombine.high %v812, %v812
        %821 = vrot.lane.b32.xlu0 %v812, 110
        %v822 = vpop.permute.xlu0 %821
        %823 = vrot.lane.b32.xlu0 %v820, 110
        %v824 = vpop.permute.xlu0 %823
        %825 = vrot.lane.b32.xlu0 %v819, 110
        %v826 = vpop.permute.xlu0 %825
        %vm827 = vcmask 900096
        %v828 = vsel %vm827, %v822, %v824
        %v829 = vsel %vm827, %v824, %v826
        %v831 = vsel %vm371, %v803, 0
        %v834 = vsel %vm375, %v828, 0
        %v837 = vsel %vm375, %v829, 0
        %839 = vmatprep.subr.bf16.mxu0 %v837
        %840 = vmatpush1.bf16.msra.mxu0 %v834
        %841 = vmatprep.subr.bf16.mxu0 0
        %842 = vmatpush1.bf16.msra.mxu0 0
        %843 = vmatprep.subr.bf16.mxu0 0
        %844 = vmatpush1.bf16.msra.mxu0 0
        %845 = vmatprep.subr.bf16.mxu0 0
        %846 = vmatpush1.bf16.msra.mxu0 0
        %847 = vmatprep.subr.bf16.mxu0 0
        %848 = vmatpush1.bf16.msra.mxu0 0
        %849 = vmatprep.subr.bf16.mxu0 0
        %850 = vmatpush1.bf16.msra.mxu0 0
        %851 = vmatprep.subr.bf16.mxu0 0
        %852 = vmatpush1.bf16.msra.mxu0 0
        %853 = vmatprep.subr.bf16.mxu0 0
        %854 = vmatpush1.bf16.msra.mxu0 0
        %855 = vmatprep.subr.bf16.mxu0 0
        %856 = vmatpush1.bf16.msra.mxu0 0
        %857 = vmatprep.subr.bf16.mxu0 0
        %858 = vmatpush1.bf16.msra.mxu0 0
        %859 = vmatprep.subr.bf16.mxu0 0
        %860 = vmatpush1.bf16.msra.mxu0 0
        %861 = vmatprep.subr.bf16.mxu0 0
        %862 = vmatpush1.bf16.msra.mxu0 0
        %863 = vmatprep.subr.bf16.mxu0 0
        %864 = vmatpush1.bf16.msra.mxu0 0
        %865 = vmatprep.subr.bf16.mxu0 0
        %866 = vmatpush1.bf16.msra.mxu0 0
        %867 = vmatprep.subr.bf16.mxu0 0
        %868 = vmatpush1.bf16.msra.mxu0 0
        %869 = vmatprep.subr.bf16.mxu0 0
        %870 = vmatpush1.bf16.msra.mxu0 0
        %871 = vmatprep.mubr.bf16.mxu0 0
        %872 = vmatmul.mubr.bf16.gmra.mrb[0].mxu0 %v831
        %v873 = vpop.f32.mrb[0].mxu0
        %v874 = vadd.f32 0.0, %v873
        %v875 = vpop.f32.mrb[0].mxu0
        %v876 = vadd.f32 0.0, %v875
        %v877 = vpop.f32.mrb[0].mxu0
        %v878 = vpop.f32.mrb[0].mxu0
        %879 = vdwg.mxu0
        %880 = vrot.lane.b32.xlu0 %v812, 126
        %v881 = vpop.permute.xlu0 %880
        %882 = vrot.lane.b32.xlu0 %v820, 126
        %v883 = vpop.permute.xlu0 %882
        %884 = vrot.lane.b32.xlu0 %v819, 126
        %v885 = vpop.permute.xlu0 %884
        %vm886 = vcmask 1031168
        %v887 = vsel %vm886, %v881, %v883
        %v888 = vsel %vm886, %v883, %v885
        %v890 = vsel %vm371, %v800, 0
        %v893 = vsel %vm375, %v887, 0
        %v896 = vsel %vm375, %v888, 0
        %898 = vmatprep.subr.bf16.mxu0 %v896
        %899 = vmatpush1.bf16.msra.mxu0 %v893
        %900 = vmatprep.subr.bf16.mxu0 0
        %901 = vmatpush1.bf16.msra.mxu0 0
        %902 = vmatprep.subr.bf16.mxu0 0
        %903 = vmatpush1.bf16.msra.mxu0 0
        %904 = vmatprep.subr.bf16.mxu0 0
        %905 = vmatpush1.bf16.msra.mxu0 0
        %906 = vmatprep.subr.bf16.mxu0 0
        %907 = vmatpush1.bf16.msra.mxu0 0
        %908 = vmatprep.subr.bf16.mxu0 0
        %909 = vmatpush1.bf16.msra.mxu0 0
        %910 = vmatprep.subr.bf16.mxu0 0
        %911 = vmatpush1.bf16.msra.mxu0 0
        %912 = vmatprep.subr.bf16.mxu0 0
        %913 = vmatpush1.bf16.msra.mxu0 0
        %914 = vmatprep.subr.bf16.mxu0 0
        %915 = vmatpush1.bf16.msra.mxu0 0
        %916 = vmatprep.subr.bf16.mxu0 0
        %917 = vmatpush1.bf16.msra.mxu0 0
        %918 = vmatprep.subr.bf16.mxu0 0
        %919 = vmatpush1.bf16.msra.mxu0 0
        %920 = vmatprep.subr.bf16.mxu0 0
        %921 = vmatpush1.bf16.msra.mxu0 0
        %922 = vmatprep.subr.bf16.mxu0 0
        %923 = vmatpush1.bf16.msra.mxu0 0
        %924 = vmatprep.subr.bf16.mxu0 0
        %925 = vmatpush1.bf16.msra.mxu0 0
        %926 = vmatprep.subr.bf16.mxu0 0
        %927 = vmatpush1.bf16.msra.mxu0 0
        %928 = vmatprep.subr.bf16.mxu0 0
        %929 = vmatpush1.bf16.msra.mxu0 0
        %930 = vmatprep.mubr.bf16.mxu0 0
        %931 = vmatmul.mubr.bf16.gmra.mrb[0].mxu0 %v890
        %v932 = vpop.f32.mrb[0].mxu0
        %v933 = vadd.f32 %v874, %v932
        %v934 = vpop.f32.mrb[0].mxu0
        %v935 = vadd.f32 %v876, %v934
        %v936 = vpop.f32.mrb[0].mxu0
        %v937 = vpop.f32.mrb[0].mxu0
        %938 = vdwg.mxu0
        %s939 = scalar_lea.vmem %s1, 32
        %v940 = vld [vmem:[%s939] sm:$0xf]
        %v941 = vld [vmem:[#allocation2] sm:$0x3f]
        %v943 = vcombine.high %v941, %v941
        %v945 = vunpack.c.l.s4 1983009808
        %v946 = vunpack.c.0.s8 %v945
        %v947 = vlaneseq
        %v948 = vshrl.u32 %v947, 7
        %v949 = vsub.s32 %v946, %v948
        %v950 = vrot.slane %v941, %v949
        %v952 = vunpack.c.l.s4 1983009808
        %v953 = vunpack.c.0.s8 %v952
        %v954 = vlaneseq
        %v955 = vshrl.u32 %v954, 7
        %v956 = vsub.s32 %v953, %v955
        %v957 = vrot.slane %v943, %v956
        %v958 = vcombine.high %v950, %v950
        %959 = vrot.lane.b32.xlu0 %v950, 94
        %v960 = vpop.permute.xlu0 %959
        %961 = vrot.lane.b32.xlu0 %v958, 94
        %v962 = vpop.permute.xlu0 %961
        %963 = vrot.lane.b32.xlu0 %v957, 94
        %v964 = vpop.permute.xlu0 %963
        %vm965 = vcmask 769024
        %v966 = vsel %vm965, %v960, %v962
        %v967 = vsel %vm965, %v962, %v964
        %v969 = vsel %vm371, %v940, 0
        %v972 = vsel %vm375, %v966, 0
        %v975 = vsel %vm375, %v967, 0
        %977 = vmatprep.subr.bf16.mxu0 %v975
        %978 = vmatpush1.bf16.msra.mxu0 %v972
        %979 = vmatprep.subr.bf16.mxu0 0
        %980 = vmatpush1.bf16.msra.mxu0 0
        %981 = vmatprep.subr.bf16.mxu0 0
        %982 = vmatpush1.bf16.msra.mxu0 0
        %983 = vmatprep.subr.bf16.mxu0 0
        %984 = vmatpush1.bf16.msra.mxu0 0
        %985 = vmatprep.subr.bf16.mxu0 0
        %986 = vmatpush1.bf16.msra.mxu0 0
        %987 = vmatprep.subr.bf16.mxu0 0
        %988 = vmatpush1.bf16.msra.mxu0 0
        %989 = vmatprep.subr.bf16.mxu0 0
        %990 = vmatpush1.bf16.msra.mxu0 0
        %991 = vmatprep.subr.bf16.mxu0 0
        %992 = vmatpush1.bf16.msra.mxu0 0
        %993 = vmatprep.subr.bf16.mxu0 0
        %994 = vmatpush1.bf16.msra.mxu0 0
        %995 = vmatprep.subr.bf16.mxu0 0
        %996 = vmatpush1.bf16.msra.mxu0 0
        %997 = vmatprep.subr.bf16.mxu0 0
        %998 = vmatpush1.bf16.msra.mxu0 0
        %999 = vmatprep.subr.bf16.mxu0 0
        %1000 = vmatpush1.bf16.msra.mxu0 0
        %1001 = vmatprep.subr.bf16.mxu0 0
        %1002 = vmatpush1.bf16.msra.mxu0 0
        %1003 = vmatprep.subr.bf16.mxu0 0
        %1004 = vmatpush1.bf16.msra.mxu0 0
        %1005 = vmatprep.subr.bf16.mxu0 0
        %1006 = vmatpush1.bf16.msra.mxu0 0
        %1007 = vmatprep.subr.bf16.mxu0 0
        %1008 = vmatpush1.bf16.msra.mxu0 0
        %1009 = vmatprep.mubr.bf16.mxu0 0
        %1010 = vmatmul.mubr.bf16.gmra.mrb[0].mxu0 %v969
        %v1011 = vpop.f32.mrb[0].mxu0
        %v1012 = vadd.f32 0.0, %v1011
        %v1013 = vpop.f32.mrb[0].mxu0
        %v1014 = vadd.f32 0.0, %v1013
        %v1015 = vpop.f32.mrb[0].mxu0
        %v1016 = vpop.f32.mrb[0].mxu0
        %1017 = vdwg.mxu0
        %v1018 = vadd.f32 %v933, %v1012
        %v1019 = vadd.f32 %v935, %v1014
        %v1021 = vlaneseq
        %v1022 = vshrl.u32 %v1021, 7
        %v1023 = vsub.s32 0, %v1022
        %v1024 = vrot.slane %v307, %v1023
        %v1025 = vlaneseq
        %v1026 = vshrl.u32 %v1025, 7
        %v1027 = vsub.s32 1, %v1026
        %v1028 = vrot.slane %v307, %v1027
        %v1031 = vmul.f32 %v1024, %v1018
        %v1032 = vmul.f32 %v1028, %v1019
        %v1033 = vadd.f32 %v797, %v1031
        %v1034 = vadd.f32 %v798, %v1032
        %v1035 = vld [vmem:[%s2] sm:$0xff]
        %1037 = vset.pattern.permute.xlu0 0
        %1038 = vperm.xlu0 %1037, %v1035
        %v1039 = vpop.permute.xlu0 %1038
        %v1041 = vmul.f32 %v1033, %v1039
        %v1042 = vmul.f32 %v1034, %v1039
        %v1043 = vld [vmem:[%s3] sm:$0xff]
        %1045 = vset.pattern.permute.xlu0 0
        %1046 = vperm.xlu0 %1045, %v1043
        %v1047 = vpop.permute.xlu0 %1046
        %v1049 = vadd.f32 %v1041, %v1047
        %v1050 = vadd.f32 %v1042, %v1047
        %v1051 = vmax.f32 %v1049, 0.0
        %v1052 = vmax.f32 %v1050, 0.0
        %vm1053 = vcmask 134144
        %1054 = vst.msk [vmem:[#allocation3] sm:$0xf] %vm1053, 0
        %vm1055 = vcmask 273544
        %1056 = vst.msk [vmem:[#allocation3 + $0x8] sm:$0xf] %vm1055, 0
        %v1057 = vpack.c.bf16 %v1051, %v1051
        %v1058 = vpack.c.bf16 %v1052, %v1052
        %v1061 = vunpack.c.l.b16 %v1057
        %v1062 = vunpack.c.l.b16 %v1058
        %v1063 = vpack.c.b16 %v1062, %v1061
        %1064 = vrot.lane.b32.xlu0 %v1063, 17
        %v1065 = vpop.permute.xlu0 %1064
        %v1066 = vrot.slane %v1065, 4
        %v1067 = vsel %vm331, %v1066, %v1065
        %vm1070 = vcmask 1043592
        %vm1071 = vcmask 1047556
        %vm1072 = vmor %vm1071, %vm1070
        %1073 = vst.msk [vmem:[#allocation3] sm:$0xff] %vm1072, %v1067
        %1074 = vst.msk [vmem:[#allocation3 + $0x8] sm:$0xf] %vm1053, %v1066
        %s1075 = scalar_lea.vmem %s4, 4
        %v1076 = vld [vmem:[%s1075] sm:$0xf]
        %v1077 = vld [vmem:[#allocation3] sm:$0xff]
        %v1078 = vld [vmem:[#allocation3 + $0x8] sm:$0xf]
        %s1079 = scalar_lea.vmem %s4, 16
        %v1080 = vld [vmem:[%s1079] sm:$0xf]
        %v1083 = vunpack.c.l.b16 %v1077
        %v1084 = vunpack.c.h.b16 %v1077
        %v1085 = vunpack.c.l.b16 %v1078
        %v1086 = vpack.c.b16 %v1083, %v1083
        %v1087 = vpack.c.b16 %v1084, %v1084
        %v1088 = vpack.c.b16 %v1085, %v1085
        %1089 = vrot.lane.b32.xlu0 %v1086, 111
        %v1090 = vpop.permute.xlu0 %1089
        %1091 = vrot.lane.b32.xlu0 %v1087, 111
        %v1092 = vpop.permute.xlu0 %1091
        %1093 = vrot.lane.b32.xlu0 %v1088, 111
        %v1094 = vpop.permute.xlu0 %1093
        %v1095 = vsel %vm368, %v1090, %v1092
        %v1096 = vsel %vm368, %v1092, %v1094
        %vm1097 = vcmask 64512
        %v1099 = vsel %vm1097, %v1080, 0
        %vm1101 = vcmask 1043456
        %v1103 = vsel %vm1101, %v1095, 0
        %v1106 = vsel %vm1101, %v1096, 0
        %1108 = vmatprep.subr.bf16.mxu0 %v1106
        %1109 = vmatpush1.bf16.msra.mxu0 %v1103
        %1110 = vmatprep.subr.bf16.mxu0 0
        %1111 = vmatpush1.bf16.msra.mxu0 0
        %1112 = vmatprep.subr.bf16.mxu0 0
        %1113 = vmatpush1.bf16.msra.mxu0 0
        %1114 = vmatprep.subr.bf16.mxu0 0
        %1115 = vmatpush1.bf16.msra.mxu0 0
        %1116 = vmatprep.subr.bf16.mxu0 0
        %1117 = vmatpush1.bf16.msra.mxu0 0
        %1118 = vmatprep.subr.bf16.mxu0 0
        %1119 = vmatpush1.bf16.msra.mxu0 0
        %1120 = vmatprep.subr.bf16.mxu0 0
        %1121 = vmatpush1.bf16.msra.mxu0 0
        %1122 = vmatprep.subr.bf16.mxu0 0
        %1123 = vmatpush1.bf16.msra.mxu0 0
        %1124 = vmatprep.subr.bf16.mxu0 0
        %1125 = vmatpush1.bf16.msra.mxu0 0
        %1126 = vmatprep.subr.bf16.mxu0 0
        %1127 = vmatpush1.bf16.msra.mxu0 0
        %1128 = vmatprep.subr.bf16.mxu0 0
        %1129 = vmatpush1.bf16.msra.mxu0 0
        %1130 = vmatprep.subr.bf16.mxu0 0
        %1131 = vmatpush1.bf16.msra.mxu0 0
        %1132 = vmatprep.subr.bf16.mxu0 0
        %1133 = vmatpush1.bf16.msra.mxu0 0
        %1134 = vmatprep.subr.bf16.mxu0 0
        %1135 = vmatpush1.bf16.msra.mxu0 0
        %1136 = vmatprep.subr.bf16.mxu0 0
        %1137 = vmatpush1.bf16.msra.mxu0 0
        %1138 = vmatprep.subr.bf16.mxu0 0
        %1139 = vmatpush1.bf16.msra.mxu0 0
        %1140 = vmatprep.mubr.bf16.mxu0 0
        %1141 = vmatmul.mubr.bf16.gmra.mrb[0].mxu0 %v1099
        %v1142 = vpop.f32.mrb[0].mxu0
        %v1143 = vadd.f32 0.0, %v1142
        %v1144 = vpop.f32.mrb[0].mxu0
        %v1145 = vadd.f32 0.0, %v1144
        %v1146 = vpop.f32.mrb[0].mxu0
        %v1147 = vpop.f32.mrb[0].mxu0
        %1148 = vdwg.mxu0
        %1149 = vrot.lane.b32.xlu0 %v1086, 127
        %v1150 = vpop.permute.xlu0 %1149
        %1151 = vrot.lane.b32.xlu0 %v1087, 127
        %v1152 = vpop.permute.xlu0 %1151
        %1153 = vrot.lane.b32.xlu0 %v1088, 127
        %v1154 = vpop.permute.xlu0 %1153
        %v1155 = vsel %vm429, %v1150, %v1152
        %v1156 = vsel %vm429, %v1152, %v1154
        %v1158 = vsel %vm1097, %v1076, 0
        %v1161 = vsel %vm1101, %v1155, 0
        %v1164 = vsel %vm1101, %v1156, 0
        %1166 = vmatprep.subr.bf16.mxu0 %v1164
        %1167 = vmatpush1.bf16.msra.mxu0 %v1161
        %1168 = vmatprep.subr.bf16.mxu0 0
        %1169 = vmatpush1.bf16.msra.mxu0 0
        %1170 = vmatprep.subr.bf16.mxu0 0
        %1171 = vmatpush1.bf16.msra.mxu0 0
        %1172 = vmatprep.subr.bf16.mxu0 0
        %1173 = vmatpush1.bf16.msra.mxu0 0
        %1174 = vmatprep.subr.bf16.mxu0 0
        %1175 = vmatpush1.bf16.msra.mxu0 0
        %1176 = vmatprep.subr.bf16.mxu0 0
        %1177 = vmatpush1.bf16.msra.mxu0 0
        %1178 = vmatprep.subr.bf16.mxu0 0
        %1179 = vmatpush1.bf16.msra.mxu0 0
        %1180 = vmatprep.subr.bf16.mxu0 0
        %1181 = vmatpush1.bf16.msra.mxu0 0
        %1182 = vmatprep.subr.bf16.mxu0 0
        %1183 = vmatpush1.bf16.msra.mxu0 0
        %1184 = vmatprep.subr.bf16.mxu0 0
        %1185 = vmatpush1.bf16.msra.mxu0 0
        %1186 = vmatprep.subr.bf16.mxu0 0
        %1187 = vmatpush1.bf16.msra.mxu0 0
        %1188 = vmatprep.subr.bf16.mxu0 0
        %1189 = vmatpush1.bf16.msra.mxu0 0
        %1190 = vmatprep.subr.bf16.mxu0 0
        %1191 = vmatpush1.bf16.msra.mxu0 0
        %1192 = vmatprep.subr.bf16.mxu0 0
        %1193 = vmatpush1.bf16.msra.mxu0 0
        %1194 = vmatprep.subr.bf16.mxu0 0
        %1195 = vmatpush1.bf16.msra.mxu0 0
        %1196 = vmatprep.subr.bf16.mxu0 0
        %1197 = vmatpush1.bf16.msra.mxu0 0
        %1198 = vmatprep.mubr.bf16.mxu0 0
        %1199 = vmatmul.mubr.bf16.gmra.mrb[0].mxu0 %v1158
        %v1200 = vpop.f32.mrb[0].mxu0
        %v1201 = vadd.f32 %v1143, %v1200
        %v1202 = vpop.f32.mrb[0].mxu0
        %v1203 = vadd.f32 %v1145, %v1202
        %v1204 = vpop.f32.mrb[0].mxu0
        %v1205 = vpop.f32.mrb[0].mxu0
        %1206 = vdwg.mxu0
        %s1207 = scalar_lea.vmem %s4, 28
        %v1208 = vld [vmem:[%s1207] sm:$0xf]
        %1209 = vrot.lane.b32.xlu0 %v1086, 95
        %v1210 = vpop.permute.xlu0 %1209
        %1211 = vrot.lane.b32.xlu0 %v1087, 95
        %v1212 = vpop.permute.xlu0 %1211
        %1213 = vrot.lane.b32.xlu0 %v1088, 95
        %v1214 = vpop.permute.xlu0 %1213
        %v1215 = vsel %vm508, %v1210, %v1212
        %v1216 = vsel %vm508, %v1212, %v1214
        %v1218 = vsel %vm1097, %v1208, 0
        %v1221 = vsel %vm1101, %v1215, 0
        %v1224 = vsel %vm1101, %v1216, 0
        %1226 = vmatprep.subr.bf16.mxu0 %v1224
        %1227 = vmatpush1.bf16.msra.mxu0 %v1221
        %1228 = vmatprep.subr.bf16.mxu0 0
        %1229 = vmatpush1.bf16.msra.mxu0 0
        %1230 = vmatprep.subr.bf16.mxu0 0
        %1231 = vmatpush1.bf16.msra.mxu0 0
        %1232 = vmatprep.subr.bf16.mxu0 0
        %1233 = vmatpush1.bf16.msra.mxu0 0
        %1234 = vmatprep.subr.bf16.mxu0 0
        %1235 = vmatpush1.bf16.msra.mxu0 0
        %1236 = vmatprep.subr.bf16.mxu0 0
        %1237 = vmatpush1.bf16.msra.mxu0 0
        %1238 = vmatprep.subr.bf16.mxu0 0
        %1239 = vmatpush1.bf16.msra.mxu0 0
        %1240 = vmatprep.subr.bf16.mxu0 0
        %1241 = vmatpush1.bf16.msra.mxu0 0
        %1242 = vmatprep.subr.bf16.mxu0 0
        %1243 = vmatpush1.bf16.msra.mxu0 0
        %1244 = vmatprep.subr.bf16.mxu0 0
        %1245 = vmatpush1.bf16.msra.mxu0 0
        %1246 = vmatprep.subr.bf16.mxu0 0
        %1247 = vmatpush1.bf16.msra.mxu0 0
        %1248 = vmatprep.subr.bf16.mxu0 0
        %1249 = vmatpush1.bf16.msra.mxu0 0
        %1250 = vmatprep.subr.bf16.mxu0 0
        %1251 = vmatpush1.bf16.msra.mxu0 0
        %1252 = vmatprep.subr.bf16.mxu0 0
        %1253 = vmatpush1.bf16.msra.mxu0 0
        %1254 = vmatprep.subr.bf16.mxu0 0
        %1255 = vmatpush1.bf16.msra.mxu0 0
        %1256 = vmatprep.subr.bf16.mxu0 0
        %1257 = vmatpush1.bf16.msra.mxu0 0
        %1258 = vmatprep.mubr.bf16.mxu0 0
        %1259 = vmatmul.mubr.bf16.gmra.mrb[0].mxu0 %v1218
        %v1260 = vpop.f32.mrb[0].mxu0
        %v1261 = vadd.f32 0.0, %v1260
        %v1262 = vpop.f32.mrb[0].mxu0
        %v1263 = vadd.f32 0.0, %v1262
        %v1264 = vpop.f32.mrb[0].mxu0
        %v1265 = vpop.f32.mrb[0].mxu0
        %1266 = vdwg.mxu0
        %v1267 = vadd.f32 %v1201, %v1261
        %v1268 = vadd.f32 %v1203, %v1263
        %v1269 = vld [vmem:[%s4] sm:$0xf]
        %v1270 = vld [vmem:[#allocation3] sm:$0xff]
        %s1271 = scalar_lea.vmem %s4, 12
        %v1272 = vld [vmem:[%s1271] sm:$0xf]
        %1273 = vrot.lane.b32.xlu0 %v1086, 112
        %v1274 = vpop.permute.xlu0 %1273
        %1275 = vrot.lane.b32.xlu0 %v1087, 112
        %v1276 = vpop.permute.xlu0 %1275
        %1277 = vrot.lane.b32.xlu0 %v1088, 112
        %v1278 = vpop.permute.xlu0 %1277
        %v1279 = vsel %vm591, %v1274, %v1276
        %v1280 = vsel %vm591, %v1276, %v1278
        %v1282 = vsel %vm1097, %v1272, 0
        %v1285 = vsel %vm1101, %v1279, 0
        %v1288 = vsel %vm1101, %v1280, 0
        %1290 = vmatprep.subr.bf16.mxu0 %v1288
        %1291 = vmatpush1.bf16.msra.mxu0 %v1285
        %1292 = vmatprep.subr.bf16.mxu0 0
        %1293 = vmatpush1.bf16.msra.mxu0 0
        %1294 = vmatprep.subr.bf16.mxu0 0
        %1295 = vmatpush1.bf16.msra.mxu0 0
        %1296 = vmatprep.subr.bf16.mxu0 0
        %1297 = vmatpush1.bf16.msra.mxu0 0
        %1298 = vmatprep.subr.bf16.mxu0 0
        %1299 = vmatpush1.bf16.msra.mxu0 0
        %1300 = vmatprep.subr.bf16.mxu0 0
        %1301 = vmatpush1.bf16.msra.mxu0 0
        %1302 = vmatprep.subr.bf16.mxu0 0
        %1303 = vmatpush1.bf16.msra.mxu0 0
        %1304 = vmatprep.subr.bf16.mxu0 0
        %1305 = vmatpush1.bf16.msra.mxu0 0
        %1306 = vmatprep.subr.bf16.mxu0 0
        %1307 = vmatpush1.bf16.msra.mxu0 0
        %1308 = vmatprep.subr.bf16.mxu0 0
        %1309 = vmatpush1.bf16.msra.mxu0 0
        %1310 = vmatprep.subr.bf16.mxu0 0
        %1311 = vmatpush1.bf16.msra.mxu0 0
        %1312 = vmatprep.subr.bf16.mxu0 0
        %1313 = vmatpush1.bf16.msra.mxu0 0
        %1314 = vmatprep.subr.bf16.mxu0 0
        %1315 = vmatpush1.bf16.msra.mxu0 0
        %1316 = vmatprep.subr.bf16.mxu0 0
        %1317 = vmatpush1.bf16.msra.mxu0 0
        %1318 = vmatprep.subr.bf16.mxu0 0
        %1319 = vmatpush1.bf16.msra.mxu0 0
        %1320 = vmatprep.subr.bf16.mxu0 0
        %1321 = vmatpush1.bf16.msra.mxu0 0
        %1322 = vmatprep.mubr.bf16.mxu0 0
        %1323 = vmatmul.mubr.bf16.gmra.mrb[0].mxu0 %v1282
        %v1324 = vpop.f32.mrb[0].mxu0
        %v1325 = vadd.f32 0.0, %v1324
        %v1326 = vpop.f32.mrb[0].mxu0
        %v1327 = vadd.f32 0.0, %v1326
        %v1328 = vpop.f32.mrb[0].mxu0
        %v1329 = vpop.f32.mrb[0].mxu0
        %1330 = vdwg.mxu0
        %v1332 = vunpack.c.l.b16 %v1270
        %v1333 = vunpack.c.h.b16 %v1270
        %v1334 = vpack.c.b16 %v1332, %v1332
        %v1335 = vpack.c.b16 %v1333, %v1333
        %v1337 = vsel %vm1097, %v1269, 0
        %v1340 = vsel %vm1101, %v1334, 0
        %v1343 = vsel %vm1101, %v1335, 0
        %1345 = vmatprep.subr.bf16.mxu0 %v1343
        %1346 = vmatpush1.bf16.msra.mxu0 %v1340
        %1347 = vmatprep.subr.bf16.mxu0 0
        %1348 = vmatpush1.bf16.msra.mxu0 0
        %1349 = vmatprep.subr.bf16.mxu0 0
        %1350 = vmatpush1.bf16.msra.mxu0 0
        %1351 = vmatprep.subr.bf16.mxu0 0
        %1352 = vmatpush1.bf16.msra.mxu0 0
        %1353 = vmatprep.subr.bf16.mxu0 0
        %1354 = vmatpush1.bf16.msra.mxu0 0
        %1355 = vmatprep.subr.bf16.mxu0 0
        %1356 = vmatpush1.bf16.msra.mxu0 0
        %1357 = vmatprep.subr.bf16.mxu0 0
        %1358 = vmatpush1.bf16.msra.mxu0 0
        %1359 = vmatprep.subr.bf16.mxu0 0
        %1360 = vmatpush1.bf16.msra.mxu0 0
        %1361 = vmatprep.subr.bf16.mxu0 0
        %1362 = vmatpush1.bf16.msra.mxu0 0
        %1363 = vmatprep.subr.bf16.mxu0 0
        %1364 = vmatpush1.bf16.msra.mxu0 0
        %1365 = vmatprep.subr.bf16.mxu0 0
        %1366 = vmatpush1.bf16.msra.mxu0 0
        %1367 = vmatprep.subr.bf16.mxu0 0
        %1368 = vmatpush1.bf16.msra.mxu0 0
        %1369 = vmatprep.subr.bf16.mxu0 0
        %1370 = vmatpush1.bf16.msra.mxu0 0
        %1371 = vmatprep.subr.bf16.mxu0 0
        %1372 = vmatpush1.bf16.msra.mxu0 0
        %1373 = vmatprep.subr.bf16.mxu0 0
        %1374 = vmatpush1.bf16.msra.mxu0 0
        %1375 = vmatprep.subr.bf16.mxu0 0
        %1376 = vmatpush1.bf16.msra.mxu0 0
        %1377 = vmatprep.mubr.bf16.mxu0 0
        %1378 = vmatmul.mubr.bf16.gmra.mrb[0].mxu0 %v1337
        %v1379 = vpop.f32.mrb[0].mxu0
        %v1380 = vadd.f32 %v1325, %v1379
        %v1381 = vpop.f32.mrb[0].mxu0
        %v1382 = vadd.f32 %v1327, %v1381
        %v1383 = vpop.f32.mrb[0].mxu0
        %v1384 = vpop.f32.mrb[0].mxu0
        %1385 = vdwg.mxu0
        %s1386 = scalar_lea.vmem %s4, 24
        %v1387 = vld [vmem:[%s1386] sm:$0xf]
        %1388 = vrot.lane.b32.xlu0 %v1086, 96
        %v1389 = vpop.permute.xlu0 %1388
        %1390 = vrot.lane.b32.xlu0 %v1087, 96
        %v1391 = vpop.permute.xlu0 %1390
        %1392 = vrot.lane.b32.xlu0 %v1088, 96
        %v1393 = vpop.permute.xlu0 %1392
        %v1394 = vsel %vm729, %v1389, %v1391
        %v1395 = vsel %vm729, %v1391, %v1393
        %v1397 = vsel %vm1097, %v1387, 0
        %v1400 = vsel %vm1101, %v1394, 0
        %v1403 = vsel %vm1101, %v1395, 0
        %1405 = vmatprep.subr.bf16.mxu0 %v1403
        %1406 = vmatpush1.bf16.msra.mxu0 %v1400
        %1407 = vmatprep.subr.bf16.mxu0 0
        %1408 = vmatpush1.bf16.msra.mxu0 0
        %1409 = vmatprep.subr.bf16.mxu0 0
        %1410 = vmatpush1.bf16.msra.mxu0 0
        %1411 = vmatprep.subr.bf16.mxu0 0
        %1412 = vmatpush1.bf16.msra.mxu0 0
        %1413 = vmatprep.subr.bf16.mxu0 0
        %1414 = vmatpush1.bf16.msra.mxu0 0
        %1415 = vmatprep.subr.bf16.mxu0 0
        %1416 = vmatpush1.bf16.msra.mxu0 0
        %1417 = vmatprep.subr.bf16.mxu0 0
        %1418 = vmatpush1.bf16.msra.mxu0 0
        %1419 = vmatprep.subr.bf16.mxu0 0
        %1420 = vmatpush1.bf16.msra.mxu0 0
        %1421 = vmatprep.subr.bf16.mxu0 0
        %1422 = vmatpush1.bf16.msra.mxu0 0
        %1423 = vmatprep.subr.bf16.mxu0 0
        %1424 = vmatpush1.bf16.msra.mxu0 0
        %1425 = vmatprep.subr.bf16.mxu0 0
        %1426 = vmatpush1.bf16.msra.mxu0 0
        %1427 = vmatprep.subr.bf16.mxu0 0
        %1428 = vmatpush1.bf16.msra.mxu0 0
        %1429 = vmatprep.subr.bf16.mxu0 0
        %1430 = vmatpush1.bf16.msra.mxu0 0
        %1431 = vmatprep.subr.bf16.mxu0 0
        %1432 = vmatpush1.bf16.msra.mxu0 0
        %1433 = vmatprep.subr.bf16.mxu0 0
        %1434 = vmatpush1.bf16.msra.mxu0 0
        %1435 = vmatprep.subr.bf16.mxu0 0
        %1436 = vmatpush1.bf16.msra.mxu0 0
        %1437 = vmatprep.mubr.bf16.mxu0 0
        %1438 = vmatmul.mubr.bf16.gmra.mrb[0].mxu0 %v1397
        %v1439 = vpop.f32.mrb[0].mxu0
        %v1440 = vadd.f32 0.0, %v1439
        %v1441 = vpop.f32.mrb[0].mxu0
        %v1442 = vadd.f32 0.0, %v1441
        %v1443 = vpop.f32.mrb[0].mxu0
        %v1444 = vpop.f32.mrb[0].mxu0
        %1445 = vdwg.mxu0
        %v1446 = vadd.f32 %v1380, %v1440
        %v1447 = vadd.f32 %v1382, %v1442
        %v1448 = vmul.f32 %v788, %v1446
        %v1449 = vmul.f32 %v792, %v1447
        %v1450 = vadd.f32 %v1267, %v1448
        %v1451 = vadd.f32 %v1268, %v1449
        %s1452 = scalar_lea.vmem %s4, 8
        %v1453 = vld [vmem:[%s1452] sm:$0xf]
        %s1454 = scalar_lea.vmem %s4, 20
        %v1455 = vld [vmem:[%s1454] sm:$0xf]
        %1456 = vrot.lane.b32.xlu0 %v1086, 110
        %v1457 = vpop.permute.xlu0 %1456
        %1458 = vrot.lane.b32.xlu0 %v1087, 110
        %v1459 = vpop.permute.xlu0 %1458
        %1460 = vrot.lane.b32.xlu0 %v1088, 110
        %v1461 = vpop.permute.xlu0 %1460
        %v1462 = vsel %vm827, %v1457, %v1459
        %v1463 = vsel %vm827, %v1459, %v1461
        %v1465 = vsel %vm1097, %v1455, 0
        %v1468 = vsel %vm1101, %v1462, 0
        %v1471 = vsel %vm1101, %v1463, 0
        %1473 = vmatprep.subr.bf16.mxu0 %v1471
        %1474 = vmatpush1.bf16.msra.mxu0 %v1468
        %1475 = vmatprep.subr.bf16.mxu0 0
        %1476 = vmatpush1.bf16.msra.mxu0 0
        %1477 = vmatprep.subr.bf16.mxu0 0
        %1478 = vmatpush1.bf16.msra.mxu0 0
        %1479 = vmatprep.subr.bf16.mxu0 0
        %1480 = vmatpush1.bf16.msra.mxu0 0
        %1481 = vmatprep.subr.bf16.mxu0 0
        %1482 = vmatpush1.bf16.msra.mxu0 0
        %1483 = vmatprep.subr.bf16.mxu0 0
        %1484 = vmatpush1.bf16.msra.mxu0 0
        %1485 = vmatprep.subr.bf16.mxu0 0
        %1486 = vmatpush1.bf16.msra.mxu0 0
        %1487 = vmatprep.subr.bf16.mxu0 0
        %1488 = vmatpush1.bf16.msra.mxu0 0
        %1489 = vmatprep.subr.bf16.mxu0 0
        %1490 = vmatpush1.bf16.msra.mxu0 0
        %1491 = vmatprep.subr.bf16.mxu0 0
        %1492 = vmatpush1.bf16.msra.mxu0 0
        %1493 = vmatprep.subr.bf16.mxu0 0
        %1494 = vmatpush1.bf16.msra.mxu0 0
        %1495 = vmatprep.subr.bf16.mxu0 0
        %1496 = vmatpush1.bf16.msra.mxu0 0
        %1497 = vmatprep.subr.bf16.mxu0 0
        %1498 = vmatpush1.bf16.msra.mxu0 0
        %1499 = vmatprep.subr.bf16.mxu0 0
        %1500 = vmatpush1.bf16.msra.mxu0 0
        %1501 = vmatprep.subr.bf16.mxu0 0
        %1502 = vmatpush1.bf16.msra.mxu0 0
        %1503 = vmatprep.subr.bf16.mxu0 0
        %1504 = vmatpush1.bf16.msra.mxu0 0
        %1505 = vmatprep.mubr.bf16.mxu0 0
        %1506 = vmatmul.mubr.bf16.gmra.mrb[0].mxu0 %v1465
        %v1507 = vpop.f32.mrb[0].mxu0
        %v1508 = vadd.f32 0.0, %v1507
        %v1509 = vpop.f32.mrb[0].mxu0
        %v1510 = vadd.f32 0.0, %v1509
        %v1511 = vpop.f32.mrb[0].mxu0
        %v1512 = vpop.f32.mrb[0].mxu0
        %1513 = vdwg.mxu0
        %1514 = vrot.lane.b32.xlu0 %v1086, 126
        %v1515 = vpop.permute.xlu0 %1514
        %1516 = vrot.lane.b32.xlu0 %v1087, 126
        %v1517 = vpop.permute.xlu0 %1516
        %1518 = vrot.lane.b32.xlu0 %v1088, 126
        %v1519 = vpop.permute.xlu0 %1518
        %v1520 = vsel %vm886, %v1515, %v1517
        %v1521 = vsel %vm886, %v1517, %v1519
        %v1523 = vsel %vm1097, %v1453, 0
        %v1526 = vsel %vm1101, %v1520, 0
        %v1529 = vsel %vm1101, %v1521, 0
        %1531 = vmatprep.subr.bf16.mxu0 %v1529
        %1532 = vmatpush1.bf16.msra.mxu0 %v1526
        %1533 = vmatprep.subr.bf16.mxu0 0
        %1534 = vmatpush1.bf16.msra.mxu0 0
        %1535 = vmatprep.subr.bf16.mxu0 0
        %1536 = vmatpush1.bf16.msra.mxu0 0
        %1537 = vmatprep.subr.bf16.mxu0 0
        %1538 = vmatpush1.bf16.msra.mxu0 0
        %1539 = vmatprep.subr.bf16.mxu0 0
        %1540 = vmatpush1.bf16.msra.mxu0 0
        %1541 = vmatprep.subr.bf16.mxu0 0
        %1542 = vmatpush1.bf16.msra.mxu0 0
        %1543 = vmatprep.subr.bf16.mxu0 0
        %1544 = vmatpush1.bf16.msra.mxu0 0
        %1545 = vmatprep.subr.bf16.mxu0 0
        %1546 = vmatpush1.bf16.msra.mxu0 0
        %1547 = vmatprep.subr.bf16.mxu0 0
        %1548 = vmatpush1.bf16.msra.mxu0 0
        %1549 = vmatprep.subr.bf16.mxu0 0
        %1550 = vmatpush1.bf16.msra.mxu0 0
        %1551 = vmatprep.subr.bf16.mxu0 0
        %1552 = vmatpush1.bf16.msra.mxu0 0
        %1553 = vmatprep.subr.bf16.mxu0 0
        %1554 = vmatpush1.bf16.msra.mxu0 0
        %1555 = vmatprep.subr.bf16.mxu0 0
        %1556 = vmatpush1.bf16.msra.mxu0 0
        %1557 = vmatprep.subr.bf16.mxu0 0
        %1558 = vmatpush1.bf16.msra.mxu0 0
        %1559 = vmatprep.subr.bf16.mxu0 0
        %1560 = vmatpush1.bf16.msra.mxu0 0
        %1561 = vmatprep.subr.bf16.mxu0 0
        %1562 = vmatpush1.bf16.msra.mxu0 0
        %1563 = vmatprep.mubr.bf16.mxu0 0
        %1564 = vmatmul.mubr.bf16.gmra.mrb[0].mxu0 %v1523
        %v1565 = vpop.f32.mrb[0].mxu0
        %v1566 = vadd.f32 %v1508, %v1565
        %v1567 = vpop.f32.mrb[0].mxu0
        %v1568 = vadd.f32 %v1510, %v1567
        %v1569 = vpop.f32.mrb[0].mxu0
        %v1570 = vpop.f32.mrb[0].mxu0
        %1571 = vdwg.mxu0
        %s1572 = scalar_lea.vmem %s4, 32
        %v1573 = vld [vmem:[%s1572] sm:$0xf]
        %1574 = vrot.lane.b32.xlu0 %v1086, 94
        %v1575 = vpop.permute.xlu0 %1574
        %1576 = vrot.lane.b32.xlu0 %v1087, 94
        %v1577 = vpop.permute.xlu0 %1576
        %1578 = vrot.lane.b32.xlu0 %v1088, 94
        %v1579 = vpop.permute.xlu0 %1578
        %v1580 = vsel %vm965, %v1575, %v1577
        %v1581 = vsel %vm965, %v1577, %v1579
        %v1583 = vsel %vm1097, %v1573, 0
        %v1586 = vsel %vm1101, %v1580, 0
        %v1589 = vsel %vm1101, %v1581, 0
        %1591 = vmatprep.subr.bf16.mxu0 %v1589
        %1592 = vmatpush1.bf16.msra.mxu0 %v1586
        %1593 = vmatprep.subr.bf16.mxu0 0
        %1594 = vmatpush1.bf16.msra.mxu0 0
        %1595 = vmatprep.subr.bf16.mxu0 0
        %1596 = vmatpush1.bf16.msra.mxu0 0
        %1597 = vmatprep.subr.bf16.mxu0 0
        %1598 = vmatpush1.bf16.msra.mxu0 0
        %1599 = vmatprep.subr.bf16.mxu0 0
        %1600 = vmatpush1.bf16.msra.mxu0 0
        %1601 = vmatprep.subr.bf16.mxu0 0
        %1602 = vmatpush1.bf16.msra.mxu0 0
        %1603 = vmatprep.subr.bf16.mxu0 0
        %1604 = vmatpush1.bf16.msra.mxu0 0
        %1605 = vmatprep.subr.bf16.mxu0 0
        %1606 = vmatpush1.bf16.msra.mxu0 0
        %1607 = vmatprep.subr.bf16.mxu0 0
        %1608 = vmatpush1.bf16.msra.mxu0 0
        %1609 = vmatprep.subr.bf16.mxu0 0
        %1610 = vmatpush1.bf16.msra.mxu0 0
        %1611 = vmatprep.subr.bf16.mxu0 0
        %1612 = vmatpush1.bf16.msra.mxu0 0
        %1613 = vmatprep.subr.bf16.mxu0 0
        %1614 = vmatpush1.bf16.msra.mxu0 0
        %1615 = vmatprep.subr.bf16.mxu0 0
        %1616 = vmatpush1.bf16.msra.mxu0 0
        %1617 = vmatprep.subr.bf16.mxu0 0
        %1618 = vmatpush1.bf16.msra.mxu0 0
        %1619 = vmatprep.subr.bf16.mxu0 0
        %1620 = vmatpush1.bf16.msra.mxu0 0
        %1621 = vmatprep.subr.bf16.mxu0 0
        %1622 = vmatpush1.bf16.msra.mxu0 0
        %1623 = vmatprep.mubr.bf16.mxu0 0
        %1624 = vmatmul.mubr.bf16.gmra.mrb[0].mxu0 %v1583
        %v1625 = vpop.f32.mrb[0].mxu0
        %v1626 = vadd.f32 0.0, %v1625
        %v1627 = vpop.f32.mrb[0].mxu0
        %v1628 = vadd.f32 0.0, %v1627
        %v1629 = vpop.f32.mrb[0].mxu0
        %v1630 = vpop.f32.mrb[0].mxu0
        %1631 = vdwg.mxu0
        %v1632 = vadd.f32 %v1566, %v1626
        %v1633 = vadd.f32 %v1568, %v1628
        %v1634 = vmul.f32 %v1024, %v1632
        %v1635 = vmul.f32 %v1028, %v1633
        %v1636 = vadd.f32 %v1450, %v1634
        %v1637 = vadd.f32 %v1451, %v1635
        %v1638 = vld [vmem:[%s5] sm:$0xff]
        %1640 = vset.pattern.permute.xlu0 0
        %1641 = vperm.xlu0 %1640, %v1638
        %v1642 = vpop.permute.xlu0 %1641
        %v1644 = vmul.f32 %v1636, %v1642
        %v1645 = vmul.f32 %v1637, %v1642
        %v1646 = vld [vmem:[%s6] sm:$0xff]
        %1648 = vset.pattern.permute.xlu0 0
        %1649 = vperm.xlu0 %1648, %v1646
        %v1650 = vpop.permute.xlu0 %1649
        %v1652 = vadd.f32 %v1644, %v1650
        %v1653 = vadd.f32 %v1645, %v1650
        %v1654 = vmax.f32 %v1652, 0.0
        %v1655 = vmax.f32 %v1653, 0.0
        %1656 = vst [vmem:[%s298] sm:$0xff] %v1654
        %1657 = vst [vmem:[%s298 + $0x8] sm:$0xff] %v1655
        %s1658 = sand.u32 %s203, 1
        %s1659 = scalar_lea.sflag [#allocation5], %s1658
        %s1660 = sand.u32 %s203, 1
        %s1661 = smul.addr %s1660, 16
        %s1662 = scalar_lea.vmem [#allocation4], %s1661
        // Predicated region
        $region53: #{tpu_custom_call.1} parent=51 // pred_check
          %p1663 = pneg %p213
        $region54: #{tpu_custom_call.1} parent=51 // pred_check_branch
          %1665 = sbr.rel (%p1663) target = $region56
        $region55: #{tpu_custom_call.1} parent=51 // pred_region
          %s1667 = ssub.s32 256, 256
          %1668 = vsyncadd %s1659, %s1667
          %s1669 = smul.addr %s22, 2
          %s1670 = smul.addr %s1669, 128
          %s1671 = scalar_lea.hbm %s8, %s1670
          %s1673 = sshll.u32 %s1662, 4
          %s1674 = int_to_ptr.vmem [resolvable:$true] %s1673
          %1676 = dma.vmem_to_hbm [thread:$0]  %s1674, 256, %s1671, %s1659
        $region56: #{tpu_custom_call.1} parent=51 // pred_fallthru
          _
      $region52: #{tpu_custom_call.1} parent=5 // pred_fallthru
        _
      %p1677 = scmp.le.s32.totalorder 2, %s17
      // Predicated region
      $region57: #{tpu_custom_call.1} parent=5 // pred_check
        %p1678 = pneg %p1677
      $region58: #{tpu_custom_call.1} parent=5 // pred_check_branch
        %1680 = sbr.rel (%p1678) target = $region60
      $region59: #{tpu_custom_call.1} parent=5 // pred_region
        %s1681 = ssub.s32 %s17, 2
        // Predicated region
        $region61: #{tpu_custom_call.1} parent=59 // pred_check
          %p1682 = pneg %p219
        $region62: #{tpu_custom_call.1} parent=59 // pred_check_branch
          %1684 = sbr.rel (%p1682) target = $region64
        $region63: #{tpu_custom_call.1} parent=59 // pred_region
          %s1685 = sand.u32 %s204, 1
          %s1686 = scalar_lea.sflag [#allocation5], %s1685
          %s1687 = sand.u32 %s204, 1
          %s1688 = smul.addr %s1687, 16
          %s1689 = scalar_lea.vmem [#allocation4], %s1688
          %1690 = dma.done %s1686, 256
        $region64: #{tpu_custom_call.1} parent=59 // pred_fallthru
          _
      $region60: #{tpu_custom_call.1} parent=5 // pred_fallthru
        _
    $region6: #{tpu_custom_call.1} parent=1 // loop_footer
      %s21 = sadd.s32 1, %s17
    $region7: #{tpu_custom_call.1} parent=1 // loop_footer_branch
      %16 = sbr.rel target = $region3
    $region8: #{tpu_custom_call.1} parent=1 // loop_exit
      _
    %1691 = vsyncpa [#allocation5], 1
    %s1692 = scalar_lea.sflag [#allocation5], 1
    %1693 = vsyncpa %s1692, 1

</llo_original>
